<compile_context>
chip_gen: v7x
topology: tpu7x:2x2x1
jax: 0.10.0
libtpu: 0.0.40
codegen_flags: <defaults>
</compile_context>

<pallas_src>
import functools
import math

import jax
import jax.numpy as jnp
from jax import lax
from jax.experimental import pallas as pl
from jax.experimental.pallas import tpu as pltpu


def _round_up(x, m):
    return ((x + m - 1) // m) * m


# ----------------------------------------------------------------------------
# Kernel 1: fused projection (hoisted out of the adjacency grid)
#   proj   = x_tile @ [W | W_self]        (one MXU matmul, f32 accumulation)
#   sup    = proj[:, :d_out]   -> bf16    (feeds the adjacency matmul)
#   selfb  = proj[:, d_out:] + bias -> f32
# ----------------------------------------------------------------------------
def _proj_kernel(x_ref, wcat_ref, bias_ref, sup_ref, selfb_ref, *, d_out):
    proj = jnp.dot(x_ref[...], wcat_ref[...],
                   preferred_element_type=jnp.float32)
    sup_ref[...] = proj[:, :d_out].astype(sup_ref.dtype)
    selfb_ref[...] = proj[:, d_out:] + bias_ref[...]


# ----------------------------------------------------------------------------
# Kernel 2: fused GCN aggregation
#   acc[i] += adj[i, k] @ support[k]       (f32 VMEM accumulator over k)
#   epilogue (k == last):
#     final   = acc + selfb[i]             (selfb already includes the bias)
#     psum[i], psq[i] = masked per-tile BatchNorm partial statistics (f32)
#     out[i]  = final.astype(bf16)         (pre-BN intermediate stays narrow)
# ----------------------------------------------------------------------------
def _agg_kernel(adj_ref, sup_ref, selfb_ref,
                out_ref, psum_ref, psq_ref, acc_ref, *, n_rows, tile_i):
    i = pl.program_id(0)
    k = pl.program_id(1)

    @pl.when(k == 0)
    def _():
        acc_ref[...] = jnp.zeros_like(acc_ref)

    acc_ref[...] += jnp.dot(adj_ref[...], sup_ref[...],
                            preferred_element_type=jnp.float32)

    @pl.when(k == pl.num_programs(1) - 1)
    def _():
        final = acc_ref[...] + selfb_ref[...]

        # BatchNorm partial statistics (f32), excluding padded rows.
        row = lax.broadcasted_iota(jnp.int32, final.shape, 0) + i * tile_i
        valid = row < n_rows
        fm = jnp.where(valid, final, 0.0)
        psum_ref[...] = jnp.sum(fm, axis=0, keepdims=True).reshape(1, 1, -1)
        psq_ref[...] = jnp.sum(fm * fm, axis=0, keepdims=True).reshape(1, 1, -1)

        out_ref[...] = final.astype(out_ref.dtype)


# ----------------------------------------------------------------------------
# Kernel 3: BatchNorm apply — single per-feature FMA (affine precombined host-side)
# ----------------------------------------------------------------------------
def _bn_apply_kernel(x_ref, a_ref, b_ref, o_ref):
    o_ref[...] = x_ref[...].astype(jnp.float32) * a_ref[...] + b_ref[...]


# ----------------------------------------------------------------------------
# Full layer
# ----------------------------------------------------------------------------
@functools.partial(jax.jit, static_argnames=("tile_i", "tile_k", "bn_eps"))
def graph_convolution_bs(adj, x, weight, self_weight, bias, gamma, beta,
                         *, tile_i=256, tile_k=512, bn_eps=1e-5):
    """tile_i / tile_k should be (power-of-two) multiples of 128; d_in / d_out
    are assumed lane-aligned (multiples of 128)."""
    n, d_in = x.shape
    d_out = weight.shape[1]

    n_pad128 = _round_up(n, 128)
    tile_i = min(tile_i, n_pad128)            # don't over-tile tiny graphs
    tile_k = min(tile_k, n_pad128)
    n_pad = _round_up(n, math.lcm(tile_i, tile_k))
    n_ti = n_pad // tile_i
    n_tk = n_pad // tile_k

    # Cast MXU operands to bf16; pad only the ragged remainder (if any).
    adj_b = adj.astype(jnp.bfloat16)
    x_b = x.astype(jnp.bfloat16)
    if n_pad != n:
        pad = n_pad - n
        adj_b = jnp.pad(adj_b, ((0, pad), (0, pad)))
        x_b = jnp.pad(x_b, ((0, pad), (0, 0)))

    w_cat = jnp.concatenate([weight, self_weight], axis=1).astype(jnp.bfloat16)
    bias2d = bias.reshape(1, d_out).astype(jnp.float32)

    # ---- kernel 1: projection (x @ [W | W_self]) -----------------------------
    support_bf, selfb = pl.pallas_call(
        functools.partial(_proj_kernel, d_out=d_out),
        out_shape=(
            jax.ShapeDtypeStruct((n_pad, d_out), jnp.bfloat16),
            jax.ShapeDtypeStruct((n_pad, d_out), jnp.float32),
        ),
        grid_spec=pltpu.PrefetchScalarGridSpec(
            num_scalar_prefetch=0,
            grid=(n_ti,),
            in_specs=[
                pl.BlockSpec((tile_i, d_in), lambda i: (i, 0)),       # x rows
                pl.BlockSpec((d_in, 2 * d_out), lambda i: (0, 0)),    # [W|W_self]
                pl.BlockSpec((1, d_out), lambda i: (0, 0)),           # bias
            ],
            out_specs=[
                pl.BlockSpec((tile_i, d_out), lambda i: (i, 0)),      # support
                pl.BlockSpec((tile_i, d_out), lambda i: (i, 0)),      # selfb
            ],
        ),
        compiler_params=pltpu.CompilerParams(
            dimension_semantics=("parallel",)),
    )(x_b, w_cat, bias2d)

    # ---- kernel 2: adjacency aggregation + bias/self-loop + BN partials ------
    pre_bn, psum, psq = pl.pallas_call(
        functools.partial(_agg_kernel, n_rows=n, tile_i=tile_i),
        out_shape=(
            jax.ShapeDtypeStruct((n_pad, d_out), jnp.bfloat16),
            jax.ShapeDtypeStruct((n_ti, 1, d_out), jnp.float32),
            jax.ShapeDtypeStruct((n_ti, 1, d_out), jnp.float32),
        ),
        grid_spec=pltpu.PrefetchScalarGridSpec(
            num_scalar_prefetch=0,
            grid=(n_ti, n_tk),
            in_specs=[
                pl.BlockSpec((tile_i, tile_k), lambda i, k: (i, k)),   # adj
                pl.BlockSpec((tile_k, d_out), lambda i, k: (k, 0)),    # support
                pl.BlockSpec((tile_i, d_out), lambda i, k: (i, 0)),    # selfb
            ],
            out_specs=[
                pl.BlockSpec((tile_i, d_out), lambda i, k: (i, 0)),    # pre_bn
                pl.BlockSpec((1, 1, d_out), lambda i, k: (i, 0, 0)),   # psum
                pl.BlockSpec((1, 1, d_out), lambda i, k: (i, 0, 0)),   # psq
            ],
            scratch_shapes=[pltpu.VMEM((tile_i, d_out), jnp.float32)],
        ),
        compiler_params=pltpu.CompilerParams(
            dimension_semantics=("parallel", "arbitrary"),
            vmem_limit_bytes=48 * 1024 * 1024,   # safe on v7x's 64 MiB VMEM
        ),
    )(adj_b, support_bf, selfb)

    # ---- BatchNorm affine from tiny partial stats (plain XLA, (d_out,)-sized) -
    total_sum = jnp.sum(psum, axis=(0, 1))
    total_sq = jnp.sum(psq, axis=(0, 1))
    mean = total_sum / n
    var = jnp.maximum(total_sq / n - mean * mean, 0.0)   # biased, training mode
    a = gamma.astype(jnp.float32) * lax.rsqrt(var + bn_eps)
    b = beta.astype(jnp.float32) - mean * a

    # ---- kernel 3: normalize (single FMA per element) -------------------------
    out = pl.pallas_call(
        _bn_apply_kernel,
        out_shape=jax.ShapeDtypeStruct((n_pad, d_out), jnp.float32),
        grid_spec=pltpu.PrefetchScalarGridSpec(
            num_scalar_prefetch=0,
            grid=(n_ti,),
            in_specs=[
                pl.BlockSpec((tile_i, d_out), lambda i: (i, 0)),
                pl.BlockSpec((1, d_out), lambda i: (0, 0)),
                pl.BlockSpec((1, d_out), lambda i: (0, 0)),
            ],
            out_specs=pl.BlockSpec((tile_i, d_out), lambda i: (i, 0)),
        ),
        compiler_params=pltpu.CompilerParams(
            dimension_semantics=("parallel",)),
    )(pre_bn, a.reshape(1, d_out), b.reshape(1, d_out))

    return out[:n]   # sigma = identity, res = False


# ----------------------------------------------------------------------------
# Reference (pure JAX, f32)
# ----------------------------------------------------------------------------
def _reference(adj, x, weight, self_weight, bias, gamma, beta, eps=1e-5):
    support = x @ weight
    out = adj @ support + x @ self_weight + bias
    mean = out.mean(axis=0, keepdims=True)
    var = ((out - mean) ** 2).mean(axis=0, keepdims=True)
    return (out - mean) * jax.lax.rsqrt(var + eps) * gamma + beta


def _make_inputs(key, n, d_in, d_out):
    k_x, k_a, k_w, k_sw, k_b = jax.random.split(key, 5)
    x = jax.random.normal(k_x, (n, d_in), jnp.float32)
    # dense row-normalized adjacency with self-loops (stands in for `graph`)
    a_raw = (jax.random.uniform(k_a, (n, n)) < 0.05).astype(jnp.float32)
    a_raw = a_raw + jnp.eye(n, dtype=jnp.float32)
    adj = a_raw / jnp.sum(a_raw, axis=1, keepdims=True)
    # parameters, matching reset_parameters(): uniform(-stdv, stdv)
    stdv = 1.0 / math.sqrt(d_out)
    weight = jax.random.uniform(k_w, (d_in, d_out), jnp.float32, -stdv, stdv)
    self_weight = jax.random.uniform(k_sw, (d_in, d_out), jnp.float32, -stdv, stdv)
    bias = jax.random.uniform(k_b, (d_out,), jnp.float32, -stdv, stdv)
    gamma = jnp.ones((d_out,), jnp.float32)   # BatchNorm1d weight init
    beta = jnp.zeros((d_out,), jnp.float32)   # BatchNorm1d bias init
    return adj, x, weight, self_weight, bias, gamma, beta


if __name__ == "__main__":
    D_IN, D_OUT = 128, 128
    key = jax.random.PRNGKey(0)
    k1, k2 = jax.random.split(key)

    # Config A: tile-aligned N, multi-tile grid (exercises k accumulation and
    # multi-tile BN stat combination).
    argsA = _make_inputs(k1, 256, D_IN, D_OUT)
    outA = jax.block_until_ready(
        graph_convolution_bs(*argsA, tile_i=128, tile_k=128))
    refA = _reference(*argsA)
    assert outA.shape == (256, D_OUT) and outA.dtype == jnp.float32
    assert jnp.allclose(outA, refA, atol=4e-2, rtol=4e-2), "mismatch (config A)"

    # Config B: non-tile-multiple N, default tiles (exercises ragged padding
    # and the masked BN statistics).
    argsB = _make_inputs(k2, 200, D_IN, D_OUT)
    outB = jax.block_until_ready(graph_convolution_bs(*argsB))
    refB = _reference(*argsB)
    assert outB.shape == (200, D_OUT) and outB.dtype == jnp.float32
    assert jnp.allclose(outB, refB, atol=4e-2, rtol=4e-2), "mismatch (config B)"

    print("KERNEL_OK")
</pallas_src>

<mosaic_0001>
module attributes {stable_mosaic.version = 11 : i64} {
  func.func @_agg_kernel(%arg0: i32, %arg1: i32, %arg2: memref<128x128xbf16, #tpu.memory_space<vmem>>, %arg3: memref<128x128xbf16, #tpu.memory_space<vmem>>, %arg4: memref<128x128xf32, #tpu.memory_space<vmem>>, %arg5: memref<128x128xbf16, #tpu.memory_space<vmem>>, %arg6: memref<1x1x128xf32, #tpu.memory_space<vmem>>, %arg7: memref<1x1x128xf32, #tpu.memory_space<vmem>>, %arg8: memref<128x128xf32, #tpu.memory_space<vmem>>) attributes {dimension_semantics = [#tpu.dimension_semantics<parallel>, #tpu.dimension_semantics<arbitrary>], iteration_bounds = array<i64: 2, 2>, scalar_prefetch = 0 : i64, scratch_operands = 1 : i64, tpu.core_type = #tpu.core_type<tc>, window_params = [{transform_indices = @transform_0, window_bounds = array<i64: 128, 128>}, {transform_indices = @transform_1, window_bounds = array<i64: 128, 128>}, {transform_indices = @transform_2, window_bounds = array<i64: 128, 128>}, {transform_indices = @transform_3, window_bounds = array<i64: 128, 128>}, {transform_indices = @transform_4, window_bounds = array<i64: 1, 1, 128>}, {transform_indices = @transform_5, window_bounds = array<i64: 1, 1, 128>}]} {
    %c0_i32 = arith.constant 0 : i32
    %0 = arith.cmpi eq, %arg1, %c0_i32 : i32
    %1 = arith.extui %0 : i1 to i32
    %c0_i32_0 = arith.constant 0 : i32
    %2 = arith.cmpi ne, %1, %c0_i32_0 : i32
    scf.if %2 {
      %cst_9 = arith.constant 0.000000e+00 : f32
      %12 = vector.broadcast %cst_9 : f32 to vector<128x128xf32>
      %c0_10 = arith.constant 0 : index
      %c0_11 = arith.constant 0 : index
      %13 = vector.load %arg8[%c0_10, %c0_11] : memref<128x128xf32, #tpu.memory_space<vmem>>, vector<128x128xf32>
      tpu.vector_store %arg8[%c0_10, %c0_11], %12 {strides = array<i32>} : memref<128x128xf32, #tpu.memory_space<vmem>>, vector<128x128xf32>,
    } else {
    }
    %c0 = arith.constant 0 : index
    %c0_1 = arith.constant 0 : index
    %3 = vector.load %arg8[%c0, %c0_1] : memref<128x128xf32, #tpu.memory_space<vmem>>, vector<128x128xf32>
    %c0_2 = arith.constant 0 : index
    %c0_3 = arith.constant 0 : index
    %4 = vector.load %arg2[%c0_2, %c0_3] : memref<128x128xbf16, #tpu.memory_space<vmem>>, vector<128x128xbf16>
    %c0_4 = arith.constant 0 : index
    %c0_5 = arith.constant 0 : index
    %5 = vector.load %arg3[%c0_4, %c0_5] : memref<128x128xbf16, #tpu.memory_space<vmem>>, vector<128x128xbf16>
    %cst = arith.constant dense<0.000000e+00> : vector<128x128xf32>
    %6 = tpu.matmul %4, %5, %cst {dimension_numbers = #tpu.dot_dimension_numbers<[1], [0], [0], [1], [0, 0, 1, 1], [], []>} : vector<128x128xbf16>, vector<128x128xbf16>, vector<128x128xf32> -> vector<128x128xf32>
    %7 = arith.addf %3, %6 : vector<128x128xf32>
    %c0_6 = arith.constant 0 : index
    %c0_7 = arith.constant 0 : index
    %8 = vector.load %arg8[%c0_6, %c0_7] : memref<128x128xf32, #tpu.memory_space<vmem>>, vector<128x128xf32>
    tpu.vector_store %arg8[%c0_6, %c0_7], %7 {strides = array<i32>} : memref<128x128xf32, #tpu.memory_space<vmem>>, vector<128x128xf32>,
    %c1_i32 = arith.constant 1 : i32
    %9 = arith.cmpi eq, %arg1, %c1_i32 : i32
    %10 = arith.extui %9 : i1 to i32
    %c0_i32_8 = arith.constant 0 : i32
    %11 = arith.cmpi ne, %10, %c0_i32_8 : i32
    scf.if %11 {
      %c0_9 = arith.constant 0 : index
      %c0_10 = arith.constant 0 : index
      %12 = vector.load %arg8[%c0_9, %c0_10] : memref<128x128xf32, #tpu.memory_space<vmem>>, vector<128x128xf32>
      %c0_11 = arith.constant 0 : index
      %c0_12 = arith.constant 0 : index
      %13 = vector.load %arg4[%c0_11, %c0_12] : memref<128x128xf32, #tpu.memory_space<vmem>>, vector<128x128xf32>
      %14 = arith.addf %12, %13 : vector<128x128xf32>
      %15 = tpu.iota {dimensions = array<i32: 0>} : vector<128x128xi32>
      %c128_i32 = arith.constant 128 : i32
      %16 = arith.muli %arg0, %c128_i32 : i32
      %17 = vector.broadcast %16 : i32 to vector<128x128xi32>
      %18 = arith.addi %15, %17 : vector<128x128xi32>
      %c256_i32 = arith.constant 256 : i32
      %19 = vector.broadcast %c256_i32 : i32 to vector<128x128xi32>
      %20 = arith.cmpi slt, %18, %19 : vector<128x128xi32>
      %cst_13 = arith.constant 0.000000e+00 : f32
      %21 = vector.broadcast %cst_13 : f32 to vector<128x128xf32>
      %22 = arith.select %20, %14, %21 : vector<128x128xi1>, vector<128x128xf32>
      %cst_14 = arith.constant dense<0.000000e+00> : vector<128xf32>
      %23 = vector.multi_reduction <add>, %22, %cst_14 [0] : vector<128x128xf32> to vector<128xf32>
      %24 = vector.shape_cast %23 : vector<128xf32> to vector<1x128xf32>
      %25 = vector.shape_cast %24 : vector<1x128xf32> to vector<1x1x128xf32>
      %c0_15 = arith.constant 0 : index
      %c0_16 = arith.constant 0 : index
      %c0_17 = arith.constant 0 : index
      %26 = vector.load %arg6[%c0_15, %c0_16, %c0_17] : memref<1x1x128xf32, #tpu.memory_space<vmem>>, vector<1x1x128xf32>
      tpu.vector_store %arg6[%c0_15, %c0_16, %c0_17], %25 {strides = array<i32>} : memref<1x1x128xf32, #tpu.memory_space<vmem>>, vector<1x1x128xf32>,
      %27 = arith.mulf %22, %22 : vector<128x128xf32>
      %cst_18 = arith.constant dense<0.000000e+00> : vector<128xf32>
      %28 = vector.multi_reduction <add>, %27, %cst_18 [0] : vector<128x128xf32> to vector<128xf32>
      %29 = vector.shape_cast %28 : vector<128xf32> to vector<1x128xf32>
      %30 = vector.shape_cast %29 : vector<1x128xf32> to vector<1x1x128xf32>
      %c0_19 = arith.constant 0 : index
      %c0_20 = arith.constant 0 : index
      %c0_21 = arith.constant 0 : index
      %31 = vector.load %arg7[%c0_19, %c0_20, %c0_21] : memref<1x1x128xf32, #tpu.memory_space<vmem>>, vector<1x1x128xf32>
      tpu.vector_store %arg7[%c0_19, %c0_20, %c0_21], %30 {strides = array<i32>} : memref<1x1x128xf32, #tpu.memory_space<vmem>>, vector<1x1x128xf32>,
      %32 = arith.truncf %14 : vector<128x128xf32> to vector<128x128xbf16>
      %c0_22 = arith.constant 0 : index
      %c0_23 = arith.constant 0 : index
      %33 = vector.load %arg5[%c0_22, %c0_23] : memref<128x128xbf16, #tpu.memory_space<vmem>>, vector<128x128xbf16>
      tpu.vector_store %arg5[%c0_22, %c0_23], %32 {strides = array<i32>} : memref<128x128xbf16, #tpu.memory_space<vmem>>, vector<128x128xbf16>,
    } else {
    }
    return
  }
  func.func @transform_0(%arg0: i32, %arg1: i32) -> (i32, i32) {
    %c0_i32 = arith.constant 0 : i32
    return %arg0, %arg1 : i32, i32
  }
  func.func @transform_1(%arg0: i32, %arg1: i32) -> (i32, i32) {
    %c0_i32 = arith.constant 0 : i32
    %c0_i32_0 = arith.constant 0 : i32
    return %arg1, %c0_i32 : i32, i32
  }
  func.func @transform_2(%arg0: i32, %arg1: i32) -> (i32, i32) {
    %c0_i32 = arith.constant 0 : i32
    %c0_i32_0 = arith.constant 0 : i32
    return %arg0, %c0_i32 : i32, i32
  }
  func.func @transform_3(%arg0: i32, %arg1: i32) -> (i32, i32) {
    %c0_i32 = arith.constant 0 : i32
    %c0_i32_0 = arith.constant 0 : i32
    return %arg0, %c0_i32 : i32, i32
  }
  func.func @transform_4(%arg0: i32, %arg1: i32) -> (i32, i32, i32) {
    %c0_i32 = arith.constant 0 : i32
    %c0_i32_0 = arith.constant 0 : i32
    %c0_i32_1 = arith.constant 0 : i32
    return %arg0, %c0_i32, %c0_i32_0 : i32, i32, i32
  }
  func.func @transform_5(%arg0: i32, %arg1: i32) -> (i32, i32, i32) {
    %c0_i32 = arith.constant 0 : i32
    %c0_i32_0 = arith.constant 0 : i32
    %c0_i32_1 = arith.constant 0 : i32
    return %arg0, %c0_i32, %c0_i32_0 : i32, i32, i32
  }
}

module attributes {stable_mosaic.version = 11 : i64} {
  func.func @_proj_kernel(%arg0: i32, %arg1: memref<128x128xbf16, #tpu.memory_space<vmem>>, %arg2: memref<128x256xbf16, #tpu.memory_space<vmem>>, %arg3: memref<1x128xf32, #tpu.memory_space<vmem>>, %arg4: memref<128x128xbf16, #tpu.memory_space<vmem>>, %arg5: memref<128x128xf32, #tpu.memory_space<vmem>>) attributes {dimension_semantics = [#tpu.dimension_semantics<parallel>], iteration_bounds = array<i64: 2>, scalar_prefetch = 0 : i64, scratch_operands = 0 : i64, tpu.core_type = #tpu.core_type<tc>, window_params = [{transform_indices = @transform_0, window_bounds = array<i64: 128, 128>}, {pipeline_mode = #tpu.pipeline_mode<synchronous>, transform_indices = @transform_1, window_bounds = array<i64: 128, 256>}, {pipeline_mode = #tpu.pipeline_mode<synchronous>, transform_indices = @transform_2, window_bounds = array<i64: 1, 128>}, {transform_indices = @transform_3, window_bounds = array<i64: 128, 128>}, {transform_indices = @transform_4, window_bounds = array<i64: 128, 128>}]} {
    %c0 = arith.constant 0 : index
    %c0_0 = arith.constant 0 : index
    %0 = vector.load %arg1[%c0, %c0_0] : memref<128x128xbf16, #tpu.memory_space<vmem>>, vector<128x128xbf16>
    %c0_1 = arith.constant 0 : index
    %c0_2 = arith.constant 0 : index
    %1 = vector.load %arg2[%c0_1, %c0_2] : memref<128x256xbf16, #tpu.memory_space<vmem>>, vector<128x256xbf16>
    %cst = arith.constant dense<0.000000e+00> : vector<128x256xf32>
    %2 = tpu.matmul %0, %1, %cst {dimension_numbers = #tpu.dot_dimension_numbers<[1], [0], [0], [1], [0, 0, 1, 1], [], []>} : vector<128x128xbf16>, vector<128x256xbf16>, vector<128x256xf32> -> vector<128x256xf32>
    %3 = vector.extract_strided_slice %2 {offsets = [0, 0], sizes = [128, 128], strides = [1, 1]} : vector<128x256xf32> to vector<128x128xf32>
    %4 = arith.truncf %3 : vector<128x128xf32> to vector<128x128xbf16>
    %c0_3 = arith.constant 0 : index
    %c0_4 = arith.constant 0 : index
    %5 = vector.load %arg4[%c0_3, %c0_4] : memref<128x128xbf16, #tpu.memory_space<vmem>>, vector<128x128xbf16>
    tpu.vector_store %arg4[%c0_3, %c0_4], %4 {strides = array<i32>} : memref<128x128xbf16, #tpu.memory_space<vmem>>, vector<128x128xbf16>,
    %6 = vector.extract_strided_slice %2 {offsets = [0, 128], sizes = [128, 128], strides = [1, 1]} : vector<128x256xf32> to vector<128x128xf32>
    %c0_5 = arith.constant 0 : index
    %c0_6 = arith.constant 0 : index
    %7 = vector.load %arg3[%c0_5, %c0_6] : memref<1x128xf32, #tpu.memory_space<vmem>>, vector<1x128xf32>
    %8 = vector.broadcast %7 : vector<1x128xf32> to vector<128x128xf32>
    %9 = arith.addf %6, %8 : vector<128x128xf32>
    %c0_7 = arith.constant 0 : index
    %c0_8 = arith.constant 0 : index
    %10 = vector.load %arg5[%c0_7, %c0_8] : memref<128x128xf32, #tpu.memory_space<vmem>>, vector<128x128xf32>
    tpu.vector_store %arg5[%c0_7, %c0_8], %9 {strides = array<i32>} : memref<128x128xf32, #tpu.memory_space<vmem>>, vector<128x128xf32>,
    return
  }
  func.func @transform_0(%arg0: i32) -> (i32, i32) {
    %c0_i32 = arith.constant 0 : i32
    %c0_i32_0 = arith.constant 0 : i32
    return %arg0, %c0_i32 : i32, i32
  }
  func.func @transform_1(%arg0: i32) -> (i32, i32) {
    %c0_i32 = arith.constant 0 : i32
    %c0_i32_0 = arith.constant 0 : i32
    %c0_i32_1 = arith.constant 0 : i32
    return %c0_i32, %c0_i32_0 : i32, i32
  }
  func.func @transform_2(%arg0: i32) -> (i32, i32) {
    %c0_i32 = arith.constant 0 : i32
    %c0_i32_0 = arith.constant 0 : i32
    %c0_i32_1 = arith.constant 0 : i32
    return %c0_i32, %c0_i32_0 : i32, i32
  }
  func.func @transform_3(%arg0: i32) -> (i32, i32) {
    %c0_i32 = arith.constant 0 : i32
    %c0_i32_0 = arith.constant 0 : i32
    return %arg0, %c0_i32 : i32, i32
  }
  func.func @transform_4(%arg0: i32) -> (i32, i32) {
    %c0_i32 = arith.constant 0 : i32
    %c0_i32_0 = arith.constant 0 : i32
    return %arg0, %c0_i32 : i32, i32
  }
}

module attributes {stable_mosaic.version = 11 : i64} {
  func.func @_bn_apply_kernel(%arg0: i32, %arg1: memref<128x128xbf16, #tpu.memory_space<vmem>>, %arg2: memref<1x128xf32, #tpu.memory_space<vmem>>, %arg3: memref<1x128xf32, #tpu.memory_space<vmem>>, %arg4: memref<128x128xf32, #tpu.memory_space<vmem>>) attributes {dimension_semantics = [#tpu.dimension_semantics<parallel>], iteration_bounds = array<i64: 2>, scalar_prefetch = 0 : i64, scratch_operands = 0 : i64, tpu.core_type = #tpu.core_type<tc>, window_params = [{transform_indices = @transform_0, window_bounds = array<i64: 128, 128>}, {pipeline_mode = #tpu.pipeline_mode<synchronous>, transform_indices = @transform_1, window_bounds = array<i64: 1, 128>}, {pipeline_mode = #tpu.pipeline_mode<synchronous>, transform_indices = @transform_2, window_bounds = array<i64: 1, 128>}, {transform_indices = @transform_3, window_bounds = array<i64: 128, 128>}]} {
    %c0 = arith.constant 0 : index
    %c0_0 = arith.constant 0 : index
    %0 = vector.load %arg1[%c0, %c0_0] : memref<128x128xbf16, #tpu.memory_space<vmem>>, vector<128x128xbf16>
    %1 = arith.extf %0 : vector<128x128xbf16> to vector<128x128xf32>
    %c0_1 = arith.constant 0 : index
    %c0_2 = arith.constant 0 : index
    %2 = vector.load %arg2[%c0_1, %c0_2] : memref<1x128xf32, #tpu.memory_space<vmem>>, vector<1x128xf32>
    %3 = vector.broadcast %2 : vector<1x128xf32> to vector<128x128xf32>
    %4 = arith.mulf %1, %3 : vector<128x128xf32>
    %c0_3 = arith.constant 0 : index
    %c0_4 = arith.constant 0 : index
    %5 = vector.load %arg3[%c0_3, %c0_4] : memref<1x128xf32, #tpu.memory_space<vmem>>, vector<1x128xf32>
    %6 = vector.broadcast %5 : vector<1x128xf32> to vector<128x128xf32>
    %7 = arith.addf %4, %6 : vector<128x128xf32>
    %c0_5 = arith.constant 0 : index
    %c0_6 = arith.constant 0 : index
    %8 = vector.load %arg4[%c0_5, %c0_6] : memref<128x128xf32, #tpu.memory_space<vmem>>, vector<128x128xf32>
    tpu.vector_store %arg4[%c0_5, %c0_6], %7 {strides = array<i32>} : memref<128x128xf32, #tpu.memory_space<vmem>>, vector<128x128xf32>,
    return
  }
  func.func @transform_0(%arg0: i32) -> (i32, i32) {
    %c0_i32 = arith.constant 0 : i32
    %c0_i32_0 = arith.constant 0 : i32
    return %arg0, %c0_i32 : i32, i32
  }
  func.func @transform_1(%arg0: i32) -> (i32, i32) {
    %c0_i32 = arith.constant 0 : i32
    %c0_i32_0 = arith.constant 0 : i32
    %c0_i32_1 = arith.constant 0 : i32
    return %c0_i32, %c0_i32_0 : i32, i32
  }
  func.func @transform_2(%arg0: i32) -> (i32, i32) {
    %c0_i32 = arith.constant 0 : i32
    %c0_i32_0 = arith.constant 0 : i32
    %c0_i32_1 = arith.constant 0 : i32
    return %c0_i32, %c0_i32_0 : i32, i32
  }
  func.func @transform_3(%arg0: i32) -> (i32, i32) {
    %c0_i32 = arith.constant 0 : i32
    %c0_i32_0 = arith.constant 0 : i32
    return %arg0, %c0_i32 : i32, i32
  }
}

</mosaic_0001>

<llo_original>
// kernel: graph_convolution_bs.5
$region0: #{graph_convolution_bs.5}
  #allocation0 [shape = 'u32[]', space=smem, size = 0x4, offset = 0x4, fixed_abs, tag = 'smem constant byte address 0x4 - core index']
  #allocation1 [shape = 'u32[144,128]{1,0:T(1,128)}', space=vmem, size = 0x12000, scoped, tag = 'internal scratch']
  %s0 = inlined_call_operand.vmem [shape: bf16[256,128], index: 0, kind: input, shape index: {}]
  %s1 = inlined_call_operand.vmem [shape: f32[1,128], index: 1, kind: input, shape index: {}]
  %s2 = inlined_call_operand.vmem [shape: f32[1,128], index: 2, kind: input, shape index: {}]
  %s3 = inlined_call_operand.hbm [shape: f32[256,128], index: 3, kind: output, shape index: {}]
  %s4 = sld [smem:[#allocation0]]
  $region45: #{graph_convolution_bs.5} parent=0
    _
  %s6 = ssub.s32 1, %s4
  %s7 = scalar_select 0, %s6, %s4
  $region1: #{graph_convolution_bs.5} parent=0
    #allocation2 [shape = 'u8[131072]{0}', space=vmem, size = 0x20000, scoped, tag = 'output window, operand 0']
    #allocation3 [shape = 's32[2]{0}', space=sflag, size = 0x8, scoped, tag = 'scoped memory for graph_convolution_bs.5']
    %8 = vsyncpa [#allocation3], 0
    %s9 = scalar_lea.sflag [#allocation3], 1
    %10 = vsyncpa %s9, 0
    loop: start=0, step=1, limit=4
    $region2: #{graph_convolution_bs.5} parent=1 // loop_pre_header
      _
    $region3: #{graph_convolution_bs.5} parent=1 // loop_header
      %s12 = sphi 0, %s16
      %p13 = scmp.ge.s32.totalorder %s12, 4
      %s22 = sphi 0, %s24
      %s25 = sphi 0, %s22
      %s26 = sphi 0, %s25
      %s42 = sphi 0, %s26
      %s46 = sphi 0, %s46
      %s48 = sphi 0, %s46
      %s49 = sphi 0, %s48
      %s63 = sphi 0, %s49
      %s67 = sphi 0, %s67
      %s69 = sphi 0, %s67
      %s70 = sphi 0, %s69
      %s84 = sphi 0, %s70
      %s90 = sphi 0, %s92
      %s93 = sphi 0, %s90
      %s94 = sphi 0, %s93
      %s110 = sphi 0, %s94
    $region4: #{graph_convolution_bs.5} parent=1 // loop_header_branch
      %15 = sbr.rel (%p13) target = $region8
    $region5: #{graph_convolution_bs.5} parent=1 // loop_body
      %s17 = ssub.s32 %s12, 1
      %s18 = ssub.s32 %s12, 2
      %s19 = sadd.s32 %s12, 1
      %s20 = ssub.s32 %s12, %s19
      %p21 = scmp.eq.s32.totalorder %s20, 0
      %s23 = sadd.s32 %s22, 1
      %s24 = scalar_select %p21, %s22, %s23
      %p27 = pneg %p21
      %p28 = scmp.eq.s32.totalorder %s12, 1
      %p29 = por %p27, %p28
      %p30 = scmp.ne.s32.totalorder %s22, %s25
      %p31 = scmp.eq.s32.totalorder %s12, 0
      %p32 = por %p30, %p31
      %p33 = scmp.ne.s32.totalorder %s22, %s25
      %p34 = scmp.eq.s32.totalorder %s17, 1
      %p35 = por %p33, %p34
      %p36 = scmp.ne.s32.totalorder %s25, %s26
      %p37 = scmp.eq.s32.totalorder %s17, 0
      %p38 = por %p36, %p37
      %p39 = scmp.ne.s32.totalorder %s25, %s26
      %p40 = scmp.eq.s32.totalorder %s18, 1
      %p41 = por %p39, %p40
      %p43 = scmp.ne.s32.totalorder %s26, %s42
      %p44 = scmp.eq.s32.totalorder %s18, 0
      %p45 = por %p43, %p44
      %s47 = sadd.s32 %s46, 1
      %p50 = scmp.eq.s32.totalorder %s12, 1
      %p51 = scmp.ne.s32.totalorder %s46, %s48
      %p52 = scmp.eq.s32.totalorder %s12, 0
      %p53 = por %p51, %p52
      %p54 = scmp.ne.s32.totalorder %s46, %s48
      %p55 = scmp.eq.s32.totalorder %s17, 1
      %p56 = por %p54, %p55
      %p57 = scmp.ne.s32.totalorder %s48, %s49
      %p58 = scmp.eq.s32.totalorder %s17, 0
      %p59 = por %p57, %p58
      %p60 = scmp.ne.s32.totalorder %s48, %s49
      %p61 = scmp.eq.s32.totalorder %s18, 1
      %p62 = por %p60, %p61
      %p64 = scmp.ne.s32.totalorder %s49, %s63
      %p65 = scmp.eq.s32.totalorder %s18, 0
      %p66 = por %p64, %p65
      %s68 = sadd.s32 %s67, 1
      %p71 = scmp.eq.s32.totalorder %s12, 1
      %p72 = scmp.ne.s32.totalorder %s67, %s69
      %p73 = scmp.eq.s32.totalorder %s12, 0
      %p74 = por %p72, %p73
      %p75 = scmp.ne.s32.totalorder %s67, %s69
      %p76 = scmp.eq.s32.totalorder %s17, 1
      %p77 = por %p75, %p76
      %p78 = scmp.ne.s32.totalorder %s69, %s70
      %p79 = scmp.eq.s32.totalorder %s17, 0
      %p80 = por %p78, %p79
      %p81 = scmp.ne.s32.totalorder %s69, %s70
      %p82 = scmp.eq.s32.totalorder %s18, 1
      %p83 = por %p81, %p82
      %p85 = scmp.ne.s32.totalorder %s70, %s84
      %p86 = scmp.eq.s32.totalorder %s18, 0
      %p87 = por %p85, %p86
      %s88 = ssub.s32 %s12, %s19
      %p89 = scmp.eq.s32.totalorder %s88, 0
      %s91 = sadd.s32 %s90, 1
      %s92 = scalar_select %p89, %s90, %s91
      %p95 = pneg %p89
      %p96 = scmp.eq.s32.totalorder %s12, 1
      %p97 = por %p95, %p96
      %p98 = scmp.ne.s32.totalorder %s90, %s93
      %p99 = scmp.eq.s32.totalorder %s12, 0
      %p100 = por %p98, %p99
      %p101 = scmp.ne.s32.totalorder %s90, %s93
      %p102 = scmp.eq.s32.totalorder %s17, 1
      %p103 = por %p101, %p102
      %p104 = scmp.ne.s32.totalorder %s93, %s94
      %p105 = scmp.eq.s32.totalorder %s17, 0
      %p106 = por %p104, %p105
      %p107 = scmp.ne.s32.totalorder %s93, %s94
      %p108 = scmp.eq.s32.totalorder %s18, 1
      %p109 = por %p107, %p108
      %p111 = scmp.ne.s32.totalorder %s94, %s110
      %p112 = scmp.eq.s32.totalorder %s18, 0
      %p113 = por %p111, %p112
      %p114 = scmp.le.s32.totalorder 1, %s12
      %p115 = scmp.lt.s32.totalorder %s12, 3
      %p116 = pnand %p114, %p115
      %p117 = pneg %p116
      // Predicated region
      $region9: #{graph_convolution_bs.5} parent=5 // pred_check
        _
      $region10: #{graph_convolution_bs.5} parent=5 // pred_check_branch
        %119 = sbr.rel (%p116) target = $region12
      $region11: #{graph_convolution_bs.5} parent=5 // pred_region
        %s120 = ssub.s32 %s12, 1
        // Predicated region
        $region13: #{graph_convolution_bs.5} parent=11 // pred_check
          %p121 = pneg %p59
        $region14: #{graph_convolution_bs.5} parent=11 // pred_check_branch
          %123 = sbr.rel (%p121) target = $region16
        $region15: #{graph_convolution_bs.5} parent=11 // pred_region
          _
        $region16: #{graph_convolution_bs.5} parent=11 // pred_fallthru
          _
        // Predicated region
        $region17: #{graph_convolution_bs.5} parent=11 // pred_check
          %p124 = pneg %p80
        $region18: #{graph_convolution_bs.5} parent=11 // pred_check_branch
          %126 = sbr.rel (%p124) target = $region20
        $region19: #{graph_convolution_bs.5} parent=11 // pred_region
          _
        $region20: #{graph_convolution_bs.5} parent=11 // pred_fallthru
          _
      $region12: #{graph_convolution_bs.5} parent=5 // pred_fallthru
        _
      %p127 = scmp.lt.s32.totalorder %s12, 2
      // Predicated region
      $region21: #{graph_convolution_bs.5} parent=5 // pred_check
        %p128 = pneg %p127
      $region22: #{graph_convolution_bs.5} parent=5 // pred_check_branch
        %130 = sbr.rel (%p128) target = $region24
      $region23: #{graph_convolution_bs.5} parent=5 // pred_region
        // Predicated region
        $region25: #{graph_convolution_bs.5} parent=23 // pred_check
          %p131 = pneg %p32
        $region26: #{graph_convolution_bs.5} parent=23 // pred_check_branch
          %133 = sbr.rel (%p131) target = $region28
        $region27: #{graph_convolution_bs.5} parent=23 // pred_region
          %s134 = smul.u32 16, %s12
          %p135 = scmp.lt.s32.totalorder %s134, 31
          %s136 = scalar_select %p135, %s134, 31
          %s137 = smul.addr %s136, 4
          %s138 = scalar_lea.vmem %s0, %s137
          %s139 = smul.u32 16, %s12
        $region28: #{graph_convolution_bs.5} parent=23 // pred_fallthru
          _
      $region24: #{graph_convolution_bs.5} parent=5 // pred_fallthru
        _
      %p140 = scmp.le.s32.totalorder 1, %s12
      %p141 = scmp.lt.s32.totalorder %s12, 3
      %p142 = pnand %p140, %p141
      %p143 = pneg %p142
      // Predicated region
      $region29: #{graph_convolution_bs.5} parent=5 // pred_check
        _
      $region30: #{graph_convolution_bs.5} parent=5 // pred_check_branch
        %145 = sbr.rel (%p142) target = $region32
      $region31: #{graph_convolution_bs.5} parent=5 // pred_region
        %s146 = ssub.s32 %s12, 1
        %s147 = smul.u32 16, %s17
        %p148 = scmp.lt.s32.totalorder %s147, 31
        %s149 = scalar_select %p148, %s147, 31
        %s150 = smul.addr %s149, 4
        %s151 = scalar_lea.vmem %s0, %s150
        %p152 = pneg %p38
        %p153 = pneg %p35
        %p154 = pneg %p59
        %p155 = pneg %p56
        %p156 = pneg %p80
        %p157 = pneg %p77
        %p158 = pneg %p106
        %p159 = pneg %p103
        %s160 = sand.u32 %s93, 1
        %s161 = scalar_lea.sflag [#allocation3], %s160
        %s162 = sand.u32 %s93, 1
        %s163 = smul.addr %s162, 128
        %s164 = scalar_lea.vmem [#allocation2], %s163
        %s165 = smul.u32 16, %s17
        %p166 = scmp.lt.s32.totalorder %s165, 31
        %s167 = scalar_select %p166, %s165, 31
        %s168 = smul.addr %s167, 4
        %s169 = scalar_lea.vmem %s0, %s168
        %s170 = smul.u32 16, %s17
        %s171 = smul.u32 16, %s17
        %v172 = vld [vmem:[%s169] sm:$0xf]
        %v173 = vld [vmem:[%s169 + $0x4] sm:$0xf]
        %v174 = vld [vmem:[%s169 + $0x8] sm:$0xf]
        %v175 = vld [vmem:[%s169 + $0xc] sm:$0xf]
        %v176 = vld [vmem:[%s169 + $0x10] sm:$0xf]
        %v177 = vld [vmem:[%s169 + $0x14] sm:$0xf]
        %v178 = vld [vmem:[%s169 + $0x18] sm:$0xf]
        %v179 = vld [vmem:[%s169 + $0x1c] sm:$0xf]
        %v180 = vld [vmem:[%s169 + $0x20] sm:$0xf]
        %v181 = vld [vmem:[%s169 + $0x24] sm:$0xf]
        %v182 = vld [vmem:[%s169 + $0x28] sm:$0xf]
        %v183 = vld [vmem:[%s169 + $0x2c] sm:$0xf]
        %v184 = vld [vmem:[%s169 + $0x30] sm:$0xf]
        %v185 = vld [vmem:[%s169 + $0x34] sm:$0xf]
        %v186 = vld [vmem:[%s169 + $0x38] sm:$0xf]
        %v187 = vld [vmem:[%s169 + $0x3c] sm:$0xf]
        %v188 = vunpack.c.l.bf16 %v172
        %v189 = vunpack.c.l.bf16 %v173
        %v190 = vunpack.c.l.bf16 %v174
        %v191 = vunpack.c.l.bf16 %v175
        %v192 = vunpack.c.l.bf16 %v176
        %v193 = vunpack.c.l.bf16 %v177
        %v194 = vunpack.c.l.bf16 %v178
        %v195 = vunpack.c.l.bf16 %v179
        %v196 = vunpack.c.l.bf16 %v180
        %v197 = vunpack.c.l.bf16 %v181
        %v198 = vunpack.c.l.bf16 %v182
        %v199 = vunpack.c.l.bf16 %v183
        %v200 = vunpack.c.l.bf16 %v184
        %v201 = vunpack.c.l.bf16 %v185
        %v202 = vunpack.c.l.bf16 %v186
        %v203 = vunpack.c.l.bf16 %v187
        %v204 = vld [vmem:[%s1] sm:$0x1]
        %v206 = vlaneseq
        %v207 = vshrl.u32 %v206, 7
        %v208 = vsub.s32 0, %v207
        %v209 = vrot.slane %v204, %v208
        %v211 = vmul.f32 %v188, %v209
        %v212 = vmul.f32 %v189, %v209
        %v213 = vmul.f32 %v190, %v209
        %v214 = vmul.f32 %v191, %v209
        %v215 = vmul.f32 %v192, %v209
        %v216 = vmul.f32 %v193, %v209
        %v217 = vmul.f32 %v194, %v209
        %v218 = vmul.f32 %v195, %v209
        %v219 = vmul.f32 %v196, %v209
        %v220 = vmul.f32 %v197, %v209
        %v221 = vmul.f32 %v198, %v209
        %v222 = vmul.f32 %v199, %v209
        %v223 = vmul.f32 %v200, %v209
        %v224 = vmul.f32 %v201, %v209
        %v225 = vmul.f32 %v202, %v209
        %v226 = vmul.f32 %v203, %v209
        %v227 = vld [vmem:[%s2] sm:$0x1]
        %v229 = vlaneseq
        %v230 = vshrl.u32 %v229, 7
        %v231 = vsub.s32 0, %v230
        %v232 = vrot.slane %v227, %v231
        %v234 = vadd.f32 %v211, %v232
        %v235 = vadd.f32 %v212, %v232
        %v236 = vadd.f32 %v213, %v232
        %v237 = vadd.f32 %v214, %v232
        %v238 = vadd.f32 %v215, %v232
        %v239 = vadd.f32 %v216, %v232
        %v240 = vadd.f32 %v217, %v232
        %v241 = vadd.f32 %v218, %v232
        %v242 = vadd.f32 %v219, %v232
        %v243 = vadd.f32 %v220, %v232
        %v244 = vadd.f32 %v221, %v232
        %v245 = vadd.f32 %v222, %v232
        %v246 = vadd.f32 %v223, %v232
        %v247 = vadd.f32 %v224, %v232
        %v248 = vadd.f32 %v225, %v232
        %v249 = vadd.f32 %v226, %v232
        %250 = vst [vmem:[%s164] sm:$0xff] %v234
        %251 = vst [vmem:[%s164 + $0x8] sm:$0xff] %v235
        %252 = vst [vmem:[%s164 + $0x10] sm:$0xff] %v236
        %253 = vst [vmem:[%s164 + $0x18] sm:$0xff] %v237
        %254 = vst [vmem:[%s164 + $0x20] sm:$0xff] %v238
        %255 = vst [vmem:[%s164 + $0x28] sm:$0xff] %v239
        %256 = vst [vmem:[%s164 + $0x30] sm:$0xff] %v240
        %257 = vst [vmem:[%s164 + $0x38] sm:$0xff] %v241
        %258 = vst [vmem:[%s164 + $0x40] sm:$0xff] %v242
        %259 = vst [vmem:[%s164 + $0x48] sm:$0xff] %v243
        %260 = vst [vmem:[%s164 + $0x50] sm:$0xff] %v244
        %261 = vst [vmem:[%s164 + $0x58] sm:$0xff] %v245
        %262 = vst [vmem:[%s164 + $0x60] sm:$0xff] %v246
        %263 = vst [vmem:[%s164 + $0x68] sm:$0xff] %v247
        %264 = vst [vmem:[%s164 + $0x70] sm:$0xff] %v248
        %265 = vst [vmem:[%s164 + $0x78] sm:$0xff] %v249
        %s266 = sand.u32 %s93, 1
        %s267 = scalar_lea.sflag [#allocation3], %s266
        %s268 = sand.u32 %s93, 1
        %s269 = smul.addr %s268, 128
        %s270 = scalar_lea.vmem [#allocation2], %s269
        // Predicated region
        $region33: #{graph_convolution_bs.5} parent=31 // pred_check
          %p271 = pneg %p103
        $region34: #{graph_convolution_bs.5} parent=31 // pred_check_branch
          %273 = sbr.rel (%p271) target = $region36
        $region35: #{graph_convolution_bs.5} parent=31 // pred_region
          %s274 = smul.u32 16, %s17
          %s276 = ssub.s32 2048, 2048
          %277 = vsyncadd %s267, %s276
          %s278 = smul.addr %s274, 128
          %s279 = scalar_lea.hbm %s3, %s278
          %s280 = sshll.u32 %s270, 4
          %s281 = int_to_ptr.vmem [resolvable:$true] %s280
          %286 = dma.vmem_to_hbm [thread:$0]  %s281, 2048, %s279, %s267, 128, 128, 8
        $region36: #{graph_convolution_bs.5} parent=31 // pred_fallthru
          _
      $region32: #{graph_convolution_bs.5} parent=5 // pred_fallthru
        _
      %p287 = scmp.le.s32.totalorder 2, %s12
      // Predicated region
      $region37: #{graph_convolution_bs.5} parent=5 // pred_check
        %p288 = pneg %p287
      $region38: #{graph_convolution_bs.5} parent=5 // pred_check_branch
        %290 = sbr.rel (%p288) target = $region40
      $region39: #{graph_convolution_bs.5} parent=5 // pred_region
        %s291 = ssub.s32 %s12, 2
        // Predicated region
        $region41: #{graph_convolution_bs.5} parent=39 // pred_check
          %p292 = pneg %p109
        $region42: #{graph_convolution_bs.5} parent=39 // pred_check_branch
          %294 = sbr.rel (%p292) target = $region44
        $region43: #{graph_convolution_bs.5} parent=39 // pred_region
          %s295 = sand.u32 %s94, 1
          %s296 = scalar_lea.sflag [#allocation3], %s295
          %s297 = sand.u32 %s94, 1
          %s298 = smul.addr %s297, 128
          %s299 = scalar_lea.vmem [#allocation2], %s298
          %300 = dma.done %s296, 2048
        $region44: #{graph_convolution_bs.5} parent=39 // pred_fallthru
          _
      $region40: #{graph_convolution_bs.5} parent=5 // pred_fallthru
        _
    $region6: #{graph_convolution_bs.5} parent=1 // loop_footer
      %s16 = sadd.s32 1, %s12
    $region7: #{graph_convolution_bs.5} parent=1 // loop_footer_branch
      %11 = sbr.rel target = $region3
    $region8: #{graph_convolution_bs.5} parent=1 // loop_exit
      _
    %301 = vsyncpa [#allocation3], 1
    %s302 = scalar_lea.sflag [#allocation3], 1
    %303 = vsyncpa %s302, 1

// kernel: graph_convolution_bs.3
$region0: #{graph_convolution_bs.3}
  #allocation0 [shape = 'u32[]', space=smem, size = 0x4, offset = 0x4, fixed_abs, tag = 'smem constant byte address 0x4 - core index']
  #allocation1 [shape = 'u32[144,128]{1,0:T(1,128)}', space=vmem, size = 0x12000, scoped, tag = 'internal scratch']
  %s0 = inlined_call_operand.vmem [shape: bf16[256,128], index: 0, kind: input, shape index: {}]
  %s1 = inlined_call_operand.vmem [shape: bf16[128,256], index: 1, kind: input, shape index: {}]
  %s2 = inlined_call_operand.vmem [shape: f32[1,128], index: 2, kind: input, shape index: {}]
  %s3 = inlined_call_operand.vmem [shape: bf16[256,128], index: 3, kind: output, shape index: {0}]
  %s4 = inlined_call_operand.vmem [shape: f32[256,128], index: 4, kind: output, shape index: {1}]
  %5 = xla_tuple %s3, %s4
  %s6 = sld [smem:[#allocation0]]
  $region53: #{graph_convolution_bs.3} parent=0
    _
  %s8 = ssub.s32 1, %s6
  %s9 = scalar_select 0, %s8, %s6
  loop: start=0, step=1, limit=4
  $region2: #{graph_convolution_bs.3} parent=0 // loop_pre_header
    _
  $region3: #{graph_convolution_bs.3} parent=0 // loop_header
    %s11 = sphi 0, %s15
    %p12 = scmp.ge.s32.totalorder %s11, 4
    %s21 = sphi 0, %s23
    %s24 = sphi 0, %s21
    %s25 = sphi 0, %s24
    %s41 = sphi 0, %s25
    %s45 = sphi 0, %s45
    %s47 = sphi 0, %s45
    %s48 = sphi 0, %s47
    %s62 = sphi 0, %s48
    %s66 = sphi 0, %s66
    %s68 = sphi 0, %s66
    %s69 = sphi 0, %s68
    %s83 = sphi 0, %s69
    %s89 = sphi 0, %s91
    %s92 = sphi 0, %s89
    %s93 = sphi 0, %s92
    %s109 = sphi 0, %s93
    %s115 = sphi 0, %s117
    %s118 = sphi 0, %s115
    %s119 = sphi 0, %s118
    %s135 = sphi 0, %s119
  $region4: #{graph_convolution_bs.3} parent=0 // loop_header_branch
    %14 = sbr.rel (%p12) target = $region8
  $region5: #{graph_convolution_bs.3} parent=0 // loop_body
    %s16 = ssub.s32 %s11, 1
    %s17 = ssub.s32 %s11, 2
    %s18 = sadd.s32 %s11, 1
    %s19 = ssub.s32 %s11, %s18
    %p20 = scmp.eq.s32.totalorder %s19, 0
    %s22 = sadd.s32 %s21, 1
    %s23 = scalar_select %p20, %s21, %s22
    %p26 = pneg %p20
    %p27 = scmp.eq.s32.totalorder %s11, 1
    %p28 = por %p26, %p27
    %p29 = scmp.ne.s32.totalorder %s21, %s24
    %p30 = scmp.eq.s32.totalorder %s11, 0
    %p31 = por %p29, %p30
    %p32 = scmp.ne.s32.totalorder %s21, %s24
    %p33 = scmp.eq.s32.totalorder %s16, 1
    %p34 = por %p32, %p33
    %p35 = scmp.ne.s32.totalorder %s24, %s25
    %p36 = scmp.eq.s32.totalorder %s16, 0
    %p37 = por %p35, %p36
    %p38 = scmp.ne.s32.totalorder %s24, %s25
    %p39 = scmp.eq.s32.totalorder %s17, 1
    %p40 = por %p38, %p39
    %p42 = scmp.ne.s32.totalorder %s25, %s41
    %p43 = scmp.eq.s32.totalorder %s17, 0
    %p44 = por %p42, %p43
    %s46 = sadd.s32 %s45, 1
    %p49 = scmp.eq.s32.totalorder %s11, 1
    %p50 = scmp.ne.s32.totalorder %s45, %s47
    %p51 = scmp.eq.s32.totalorder %s11, 0
    %p52 = por %p50, %p51
    %p53 = scmp.ne.s32.totalorder %s45, %s47
    %p54 = scmp.eq.s32.totalorder %s16, 1
    %p55 = por %p53, %p54
    %p56 = scmp.ne.s32.totalorder %s47, %s48
    %p57 = scmp.eq.s32.totalorder %s16, 0
    %p58 = por %p56, %p57
    %p59 = scmp.ne.s32.totalorder %s47, %s48
    %p60 = scmp.eq.s32.totalorder %s17, 1
    %p61 = por %p59, %p60
    %p63 = scmp.ne.s32.totalorder %s48, %s62
    %p64 = scmp.eq.s32.totalorder %s17, 0
    %p65 = por %p63, %p64
    %s67 = sadd.s32 %s66, 1
    %p70 = scmp.eq.s32.totalorder %s11, 1
    %p71 = scmp.ne.s32.totalorder %s66, %s68
    %p72 = scmp.eq.s32.totalorder %s11, 0
    %p73 = por %p71, %p72
    %p74 = scmp.ne.s32.totalorder %s66, %s68
    %p75 = scmp.eq.s32.totalorder %s16, 1
    %p76 = por %p74, %p75
    %p77 = scmp.ne.s32.totalorder %s68, %s69
    %p78 = scmp.eq.s32.totalorder %s16, 0
    %p79 = por %p77, %p78
    %p80 = scmp.ne.s32.totalorder %s68, %s69
    %p81 = scmp.eq.s32.totalorder %s17, 1
    %p82 = por %p80, %p81
    %p84 = scmp.ne.s32.totalorder %s69, %s83
    %p85 = scmp.eq.s32.totalorder %s17, 0
    %p86 = por %p84, %p85
    %s87 = ssub.s32 %s11, %s18
    %p88 = scmp.eq.s32.totalorder %s87, 0
    %s90 = sadd.s32 %s89, 1
    %s91 = scalar_select %p88, %s89, %s90
    %p94 = pneg %p88
    %p95 = scmp.eq.s32.totalorder %s11, 1
    %p96 = por %p94, %p95
    %p97 = scmp.ne.s32.totalorder %s89, %s92
    %p98 = scmp.eq.s32.totalorder %s11, 0
    %p99 = por %p97, %p98
    %p100 = scmp.ne.s32.totalorder %s89, %s92
    %p101 = scmp.eq.s32.totalorder %s16, 1
    %p102 = por %p100, %p101
    %p103 = scmp.ne.s32.totalorder %s92, %s93
    %p104 = scmp.eq.s32.totalorder %s16, 0
    %p105 = por %p103, %p104
    %p106 = scmp.ne.s32.totalorder %s92, %s93
    %p107 = scmp.eq.s32.totalorder %s17, 1
    %p108 = por %p106, %p107
    %p110 = scmp.ne.s32.totalorder %s93, %s109
    %p111 = scmp.eq.s32.totalorder %s17, 0
    %p112 = por %p110, %p111
    %s113 = ssub.s32 %s11, %s18
    %p114 = scmp.eq.s32.totalorder %s113, 0
    %s116 = sadd.s32 %s115, 1
    %s117 = scalar_select %p114, %s115, %s116
    %p120 = pneg %p114
    %p121 = scmp.eq.s32.totalorder %s11, 1
    %p122 = por %p120, %p121
    %p123 = scmp.ne.s32.totalorder %s115, %s118
    %p124 = scmp.eq.s32.totalorder %s11, 0
    %p125 = por %p123, %p124
    %p126 = scmp.ne.s32.totalorder %s115, %s118
    %p127 = scmp.eq.s32.totalorder %s16, 1
    %p128 = por %p126, %p127
    %p129 = scmp.ne.s32.totalorder %s118, %s119
    %p130 = scmp.eq.s32.totalorder %s16, 0
    %p131 = por %p129, %p130
    %p132 = scmp.ne.s32.totalorder %s118, %s119
    %p133 = scmp.eq.s32.totalorder %s17, 1
    %p134 = por %p132, %p133
    %p136 = scmp.ne.s32.totalorder %s119, %s135
    %p137 = scmp.eq.s32.totalorder %s17, 0
    %p138 = por %p136, %p137
    %p139 = scmp.le.s32.totalorder 1, %s11
    %p140 = scmp.lt.s32.totalorder %s11, 3
    %p141 = pnand %p139, %p140
    %p142 = pneg %p141
    // Predicated region
    $region9: #{graph_convolution_bs.3} parent=5 // pred_check
      _
    $region10: #{graph_convolution_bs.3} parent=5 // pred_check_branch
      %144 = sbr.rel (%p141) target = $region12
    $region11: #{graph_convolution_bs.3} parent=5 // pred_region
      %s145 = ssub.s32 %s11, 1
      // Predicated region
      $region13: #{graph_convolution_bs.3} parent=11 // pred_check
        %p146 = pneg %p58
      $region14: #{graph_convolution_bs.3} parent=11 // pred_check_branch
        %148 = sbr.rel (%p146) target = $region16
      $region15: #{graph_convolution_bs.3} parent=11 // pred_region
        _
      $region16: #{graph_convolution_bs.3} parent=11 // pred_fallthru
        _
      // Predicated region
      $region17: #{graph_convolution_bs.3} parent=11 // pred_check
        %p149 = pneg %p79
      $region18: #{graph_convolution_bs.3} parent=11 // pred_check_branch
        %151 = sbr.rel (%p149) target = $region20
      $region19: #{graph_convolution_bs.3} parent=11 // pred_region
        _
      $region20: #{graph_convolution_bs.3} parent=11 // pred_fallthru
        _
    $region12: #{graph_convolution_bs.3} parent=5 // pred_fallthru
      _
    %p152 = scmp.lt.s32.totalorder %s11, 2
    // Predicated region
    $region21: #{graph_convolution_bs.3} parent=5 // pred_check
      %p153 = pneg %p152
    $region22: #{graph_convolution_bs.3} parent=5 // pred_check_branch
      %155 = sbr.rel (%p153) target = $region24
    $region23: #{graph_convolution_bs.3} parent=5 // pred_region
      // Predicated region
      $region25: #{graph_convolution_bs.3} parent=23 // pred_check
        %p156 = pneg %p31
      $region26: #{graph_convolution_bs.3} parent=23 // pred_check_branch
        %158 = sbr.rel (%p156) target = $region28
      $region27: #{graph_convolution_bs.3} parent=23 // pred_region
        %s159 = smul.u32 16, %s11
        %p160 = scmp.lt.s32.totalorder %s159, 31
        %s161 = scalar_select %p160, %s159, 31
        %s162 = smul.addr %s161, 4
        %s163 = scalar_lea.vmem %s0, %s162
        %s164 = smul.u32 16, %s11
      $region28: #{graph_convolution_bs.3} parent=23 // pred_fallthru
        _
    $region24: #{graph_convolution_bs.3} parent=5 // pred_fallthru
      _
    %p165 = scmp.le.s32.totalorder 1, %s11
    %p166 = scmp.lt.s32.totalorder %s11, 3
    %p167 = pnand %p165, %p166
    %p168 = pneg %p167
    // Predicated region
    $region29: #{graph_convolution_bs.3} parent=5 // pred_check
      _
    $region30: #{graph_convolution_bs.3} parent=5 // pred_check_branch
      %170 = sbr.rel (%p167) target = $region32
    $region31: #{graph_convolution_bs.3} parent=5 // pred_region
      %s171 = ssub.s32 %s11, 1
      %s172 = smul.u32 16, %s16
      %p173 = scmp.lt.s32.totalorder %s172, 31
      %s174 = scalar_select %p173, %s172, 31
      %s175 = smul.addr %s174, 4
      %s176 = scalar_lea.vmem %s0, %s175
      %p177 = pneg %p37
      %p178 = pneg %p34
      %p179 = pneg %p58
      %p180 = pneg %p55
      %p181 = pneg %p79
      %p182 = pneg %p76
      %p183 = pneg %p105
      %p184 = pneg %p102
      %s185 = smul.u32 16, %s16
      %p186 = scmp.lt.s32.totalorder %s185, 31
      %s187 = scalar_select %p186, %s185, 31
      %s188 = smul.addr %s187, 4
      %s189 = scalar_lea.vmem %s3, %s188
      %p190 = pneg %p131
      %p191 = pneg %p128
      %s192 = smul.u32 16, %s16
      %p193 = scmp.lt.s32.totalorder %s192, 31
      %s194 = scalar_select %p193, %s192, 31
      %s195 = smul.addr %s194, 8
      %s196 = scalar_lea.vmem %s4, %s195
      %s197 = smul.u32 16, %s16
      %p198 = scmp.lt.s32.totalorder %s197, 31
      %s199 = scalar_select %p198, %s197, 31
      %s200 = smul.addr %s199, 4
      %s201 = scalar_lea.vmem %s0, %s200
      %s202 = smul.u32 16, %s16
      %s203 = smul.u32 16, %s16
      %p204 = scmp.lt.s32.totalorder %s203, 31
      %s205 = scalar_select %p204, %s203, 31
      %s206 = smul.addr %s205, 4
      %s207 = scalar_lea.vmem %s3, %s206
      %s208 = smul.u32 16, %s16
      %s209 = smul.u32 16, %s16
      %p210 = scmp.lt.s32.totalorder %s209, 31
      %s211 = scalar_select %p210, %s209, 31
      %s212 = smul.addr %s211, 8
      %s213 = scalar_lea.vmem %s4, %s212
      %s214 = smul.u32 16, %s16
      %v216 = vld [vmem:[%s201] sm:$0xf]
      %v217 = vld [vmem:[%s201 + $0x4] sm:$0xf]
      %v218 = vld [vmem:[%s201 + $0x8] sm:$0xf]
      %v219 = vld [vmem:[%s201 + $0xc] sm:$0xf]
      %v220 = vld [vmem:[%s201 + $0x10] sm:$0xf]
      %v221 = vld [vmem:[%s201 + $0x14] sm:$0xf]
      %v222 = vld [vmem:[%s201 + $0x18] sm:$0xf]
      %v223 = vld [vmem:[%s201 + $0x1c] sm:$0xf]
      %v224 = vld [vmem:[%s201 + $0x20] sm:$0xf]
      %v225 = vld [vmem:[%s201 + $0x24] sm:$0xf]
      %v226 = vld [vmem:[%s201 + $0x28] sm:$0xf]
      %v227 = vld [vmem:[%s201 + $0x2c] sm:$0xf]
      %v228 = vld [vmem:[%s201 + $0x30] sm:$0xf]
      %v229 = vld [vmem:[%s201 + $0x34] sm:$0xf]
      %v230 = vld [vmem:[%s201 + $0x38] sm:$0xf]
      %v231 = vld [vmem:[%s201 + $0x3c] sm:$0xf]
      %v232 = vld [vmem:[%s1] sm:$0xff]
      %v233 = vld [vmem:[%s1 + $0x8] sm:$0xff]
      %v234 = vld [vmem:[%s1 + $0x10] sm:$0xff]
      %v235 = vld [vmem:[%s1 + $0x18] sm:$0xff]
      %v236 = vld [vmem:[%s1 + $0x20] sm:$0xff]
      %v237 = vld [vmem:[%s1 + $0x28] sm:$0xff]
      %v238 = vld [vmem:[%s1 + $0x30] sm:$0xff]
      %v239 = vld [vmem:[%s1 + $0x38] sm:$0xff]
      %v240 = vld [vmem:[%s1 + $0x40] sm:$0xff]
      %v241 = vld [vmem:[%s1 + $0x48] sm:$0xff]
      %v242 = vld [vmem:[%s1 + $0x50] sm:$0xff]
      %v243 = vld [vmem:[%s1 + $0x58] sm:$0xff]
      %v244 = vld [vmem:[%s1 + $0x60] sm:$0xff]
      %v245 = vld [vmem:[%s1 + $0x68] sm:$0xff]
      %v246 = vld [vmem:[%s1 + $0x70] sm:$0xff]
      %v247 = vld [vmem:[%s1 + $0x78] sm:$0xff]
      %v264 = vunpack.c.l.b16 %v216
      %v265 = vunpack.c.l.b16 %v217
      %v266 = vunpack.c.l.b16 %v218
      %v267 = vunpack.c.l.b16 %v219
      %v268 = vunpack.c.l.b16 %v220
      %v269 = vunpack.c.l.b16 %v221
      %v270 = vunpack.c.l.b16 %v222
      %v271 = vunpack.c.l.b16 %v223
      %v272 = vunpack.c.l.b16 %v224
      %v273 = vunpack.c.l.b16 %v225
      %v274 = vunpack.c.l.b16 %v226
      %v275 = vunpack.c.l.b16 %v227
      %v276 = vunpack.c.l.b16 %v228
      %v277 = vunpack.c.l.b16 %v229
      %v278 = vunpack.c.l.b16 %v230
      %v279 = vunpack.c.l.b16 %v231
      %v280 = vpack.c.b16 %v265, %v264
      %v281 = vpack.c.b16 %v267, %v266
      %v282 = vpack.c.b16 %v269, %v268
      %v283 = vpack.c.b16 %v271, %v270
      %v284 = vpack.c.b16 %v273, %v272
      %v285 = vpack.c.b16 %v275, %v274
      %v286 = vpack.c.b16 %v277, %v276
      %v287 = vpack.c.b16 %v279, %v278
      %v312 = vunpack.c.l.b16 %v232
      %v313 = vunpack.c.h.b16 %v232
      %v314 = vunpack.c.l.b16 %v233
      %v315 = vunpack.c.h.b16 %v233
      %v316 = vunpack.c.l.b16 %v234
      %v317 = vunpack.c.h.b16 %v234
      %v318 = vunpack.c.l.b16 %v235
      %v319 = vunpack.c.h.b16 %v235
      %v320 = vunpack.c.l.b16 %v236
      %v321 = vunpack.c.h.b16 %v236
      %v322 = vunpack.c.l.b16 %v237
      %v323 = vunpack.c.h.b16 %v237
      %v324 = vunpack.c.l.b16 %v238
      %v325 = vunpack.c.h.b16 %v238
      %v326 = vunpack.c.l.b16 %v239
      %v327 = vunpack.c.h.b16 %v239
      %v328 = vunpack.c.l.b16 %v240
      %v329 = vunpack.c.h.b16 %v240
      %v330 = vunpack.c.l.b16 %v241
      %v331 = vunpack.c.h.b16 %v241
      %v332 = vunpack.c.l.b16 %v242
      %v333 = vunpack.c.h.b16 %v242
      %v334 = vunpack.c.l.b16 %v243
      %v335 = vunpack.c.h.b16 %v243
      %v336 = vunpack.c.l.b16 %v244
      %v337 = vunpack.c.h.b16 %v244
      %v338 = vunpack.c.l.b16 %v245
      %v339 = vunpack.c.h.b16 %v245
      %v340 = vunpack.c.l.b16 %v246
      %v341 = vunpack.c.h.b16 %v246
      %v342 = vunpack.c.l.b16 %v247
      %v343 = vunpack.c.h.b16 %v247
      %v344 = vpack.c.b16 %v314, %v312
      %v345 = vpack.c.b16 %v315, %v313
      %v346 = vpack.c.b16 %v318, %v316
      %v347 = vpack.c.b16 %v319, %v317
      %v348 = vpack.c.b16 %v322, %v320
      %v349 = vpack.c.b16 %v323, %v321
      %v350 = vpack.c.b16 %v326, %v324
      %v351 = vpack.c.b16 %v327, %v325
      %v352 = vpack.c.b16 %v330, %v328
      %v353 = vpack.c.b16 %v331, %v329
      %v354 = vpack.c.b16 %v334, %v332
      %v355 = vpack.c.b16 %v335, %v333
      %v356 = vpack.c.b16 %v338, %v336
      %v357 = vpack.c.b16 %v339, %v337
      %v358 = vpack.c.b16 %v342, %v340
      %v359 = vpack.c.b16 %v343, %v341
      %376 = vmatprep.subr.bf16.mxu0 %v345
      %377 = vmatpush1.bf16.msra.mxu0 %v344
      %378 = vmatprep.subr.bf16.mxu0 %v347
      %379 = vmatpush1.bf16.msra.mxu0 %v346
      %380 = vmatprep.subr.bf16.mxu0 %v349
      %381 = vmatpush1.bf16.msra.mxu0 %v348
      %382 = vmatprep.subr.bf16.mxu0 %v351
      %383 = vmatpush1.bf16.msra.mxu0 %v350
      %384 = vmatprep.subr.bf16.mxu0 %v353
      %385 = vmatpush1.bf16.msra.mxu0 %v352
      %386 = vmatprep.subr.bf16.mxu0 %v355
      %387 = vmatpush1.bf16.msra.mxu0 %v354
      %388 = vmatprep.subr.bf16.mxu0 %v357
      %389 = vmatpush1.bf16.msra.mxu0 %v356
      %390 = vmatprep.subr.bf16.mxu0 %v359
      %391 = vmatpush1.bf16.msra.mxu0 %v358
      %392 = vmatprep.subr.bf16.mxu0 0
      %393 = vmatpush1.bf16.msra.mxu0 0
      %394 = vmatprep.subr.bf16.mxu0 0
      %395 = vmatpush1.bf16.msra.mxu0 0
      %396 = vmatprep.subr.bf16.mxu0 0
      %397 = vmatpush1.bf16.msra.mxu0 0
      %398 = vmatprep.subr.bf16.mxu0 0
      %399 = vmatpush1.bf16.msra.mxu0 0
      %400 = vmatprep.subr.bf16.mxu0 0
      %401 = vmatpush1.bf16.msra.mxu0 0
      %402 = vmatprep.subr.bf16.mxu0 0
      %403 = vmatpush1.bf16.msra.mxu0 0
      %404 = vmatprep.subr.bf16.mxu0 0
      %405 = vmatpush1.bf16.msra.mxu0 0
      %406 = vmatprep.subr.bf16.mxu0 0
      %407 = vmatpush1.bf16.msra.mxu0 0
      %408 = vmatprep.mubr.bf16.mxu0 0
      %409 = vmatmul.mubr.bf16.gmra.mrb[0].mxu0 %v280
      %v410 = vpop.f32.mrb[0].mxu0
      %v411 = vadd.f32 0.0, %v410
      %v412 = vpop.f32.mrb[0].mxu0
      %v413 = vadd.f32 0.0, %v412
      %v414 = vpop.f32.mrb[0].mxu0
      %v415 = vadd.f32 0.0, %v414
      %v416 = vpop.f32.mrb[0].mxu0
      %v417 = vadd.f32 0.0, %v416
      %418 = vmatprep.mubr.bf16.mxu0 0
      %419 = vmatmul.mubr.bf16.gmra.mrb[0].mxu0 %v281
      %v420 = vpop.f32.mrb[0].mxu0
      %v421 = vadd.f32 0.0, %v420
      %v422 = vpop.f32.mrb[0].mxu0
      %v423 = vadd.f32 0.0, %v422
      %v424 = vpop.f32.mrb[0].mxu0
      %v425 = vadd.f32 0.0, %v424
      %v426 = vpop.f32.mrb[0].mxu0
      %v427 = vadd.f32 0.0, %v426
      %428 = vmatprep.mubr.bf16.mxu0 0
      %429 = vmatmul.mubr.bf16.gmra.mrb[0].mxu0 %v282
      %v430 = vpop.f32.mrb[0].mxu0
      %v431 = vadd.f32 0.0, %v430
      %v432 = vpop.f32.mrb[0].mxu0
      %v433 = vadd.f32 0.0, %v432
      %v434 = vpop.f32.mrb[0].mxu0
      %v435 = vadd.f32 0.0, %v434
      %v436 = vpop.f32.mrb[0].mxu0
      %v437 = vadd.f32 0.0, %v436
      %438 = vmatprep.mubr.bf16.mxu0 0
      %439 = vmatmul.mubr.bf16.gmra.mrb[0].mxu0 %v283
      %v440 = vpop.f32.mrb[0].mxu0
      %v441 = vadd.f32 0.0, %v440
      %v442 = vpop.f32.mrb[0].mxu0
      %v443 = vadd.f32 0.0, %v442
      %v444 = vpop.f32.mrb[0].mxu0
      %v445 = vadd.f32 0.0, %v444
      %v446 = vpop.f32.mrb[0].mxu0
      %v447 = vadd.f32 0.0, %v446
      %448 = vmatprep.mubr.bf16.mxu0 0
      %449 = vmatmul.mubr.bf16.gmra.mrb[0].mxu0 %v284
      %v450 = vpop.f32.mrb[0].mxu0
      %v451 = vadd.f32 0.0, %v450
      %v452 = vpop.f32.mrb[0].mxu0
      %v453 = vadd.f32 0.0, %v452
      %v454 = vpop.f32.mrb[0].mxu0
      %v455 = vadd.f32 0.0, %v454
      %v456 = vpop.f32.mrb[0].mxu0
      %v457 = vadd.f32 0.0, %v456
      %458 = vmatprep.mubr.bf16.mxu0 0
      %459 = vmatmul.mubr.bf16.gmra.mrb[0].mxu0 %v285
      %v460 = vpop.f32.mrb[0].mxu0
      %v461 = vadd.f32 0.0, %v460
      %v462 = vpop.f32.mrb[0].mxu0
      %v463 = vadd.f32 0.0, %v462
      %v464 = vpop.f32.mrb[0].mxu0
      %v465 = vadd.f32 0.0, %v464
      %v466 = vpop.f32.mrb[0].mxu0
      %v467 = vadd.f32 0.0, %v466
      %468 = vmatprep.mubr.bf16.mxu0 0
      %469 = vmatmul.mubr.bf16.gmra.mrb[0].mxu0 %v286
      %v470 = vpop.f32.mrb[0].mxu0
      %v471 = vadd.f32 0.0, %v470
      %v472 = vpop.f32.mrb[0].mxu0
      %v473 = vadd.f32 0.0, %v472
      %v474 = vpop.f32.mrb[0].mxu0
      %v475 = vadd.f32 0.0, %v474
      %v476 = vpop.f32.mrb[0].mxu0
      %v477 = vadd.f32 0.0, %v476
      %478 = vmatprep.mubr.bf16.mxu0 0
      %479 = vmatmul.mubr.bf16.gmra.mrb[0].mxu0 %v287
      %v480 = vpop.f32.mrb[0].mxu0
      %v481 = vadd.f32 0.0, %v480
      %v482 = vpop.f32.mrb[0].mxu0
      %v483 = vadd.f32 0.0, %v482
      %v484 = vpop.f32.mrb[0].mxu0
      %v485 = vadd.f32 0.0, %v484
      %v486 = vpop.f32.mrb[0].mxu0
      %v487 = vadd.f32 0.0, %v486
      %488 = vdwg.mxu0
      %v489 = vpack.c.bf16 %v415, %v411
      %v490 = vpack.c.bf16 %v425, %v421
      %v491 = vpack.c.bf16 %v435, %v431
      %v492 = vpack.c.bf16 %v445, %v441
      %v493 = vpack.c.bf16 %v455, %v451
      %v494 = vpack.c.bf16 %v465, %v461
      %v495 = vpack.c.bf16 %v475, %v471
      %v496 = vpack.c.bf16 %v485, %v481
      %v505 = vunpack.c.l.b16 %v489
      %v506 = vunpack.c.h.b16 %v489
      %v507 = vunpack.c.l.b16 %v490
      %v508 = vunpack.c.h.b16 %v490
      %v509 = vunpack.c.l.b16 %v491
      %v510 = vunpack.c.h.b16 %v491
      %v511 = vunpack.c.l.b16 %v492
      %v512 = vunpack.c.h.b16 %v492
      %v513 = vunpack.c.l.b16 %v493
      %v514 = vunpack.c.h.b16 %v493
      %v515 = vunpack.c.l.b16 %v494
      %v516 = vunpack.c.h.b16 %v494
      %v517 = vunpack.c.l.b16 %v495
      %v518 = vunpack.c.h.b16 %v495
      %v519 = vunpack.c.l.b16 %v496
      %v520 = vunpack.c.h.b16 %v496
      %v521 = vpack.c.b16 %v505, %v505
      %v522 = vpack.c.b16 %v506, %v506
      %v523 = vpack.c.b16 %v507, %v507
      %v524 = vpack.c.b16 %v508, %v508
      %v525 = vpack.c.b16 %v509, %v509
      %v526 = vpack.c.b16 %v510, %v510
      %v527 = vpack.c.b16 %v511, %v511
      %v528 = vpack.c.b16 %v512, %v512
      %v529 = vpack.c.b16 %v513, %v513
      %v530 = vpack.c.b16 %v514, %v514
      %v531 = vpack.c.b16 %v515, %v515
      %v532 = vpack.c.b16 %v516, %v516
      %v533 = vpack.c.b16 %v517, %v517
      %v534 = vpack.c.b16 %v518, %v518
      %v535 = vpack.c.b16 %v519, %v519
      %v536 = vpack.c.b16 %v520, %v520
      %553 = vst [vmem:[%s207] sm:$0xf] %v521
      %554 = vst [vmem:[%s207 + $0x4] sm:$0xf] %v522
      %555 = vst [vmem:[%s207 + $0x8] sm:$0xf] %v523
      %556 = vst [vmem:[%s207 + $0xc] sm:$0xf] %v524
      %557 = vst [vmem:[%s207 + $0x10] sm:$0xf] %v525
      %558 = vst [vmem:[%s207 + $0x14] sm:$0xf] %v526
      %559 = vst [vmem:[%s207 + $0x18] sm:$0xf] %v527
      %560 = vst [vmem:[%s207 + $0x1c] sm:$0xf] %v528
      %561 = vst [vmem:[%s207 + $0x20] sm:$0xf] %v529
      %562 = vst [vmem:[%s207 + $0x24] sm:$0xf] %v530
      %563 = vst [vmem:[%s207 + $0x28] sm:$0xf] %v531
      %564 = vst [vmem:[%s207 + $0x2c] sm:$0xf] %v532
      %565 = vst [vmem:[%s207 + $0x30] sm:$0xf] %v533
      %566 = vst [vmem:[%s207 + $0x34] sm:$0xf] %v534
      %567 = vst [vmem:[%s207 + $0x38] sm:$0xf] %v535
      %568 = vst [vmem:[%s207 + $0x3c] sm:$0xf] %v536
      %v569 = vld [vmem:[%s2] sm:$0x1]
      %v571 = vlaneseq
      %v572 = vshrl.u32 %v571, 7
      %v573 = vsub.s32 0, %v572
      %v574 = vrot.slane %v569, %v573
      %v576 = vadd.f32 %v413, %v574
      %v577 = vadd.f32 %v417, %v574
      %v578 = vadd.f32 %v423, %v574
      %v579 = vadd.f32 %v427, %v574
      %v580 = vadd.f32 %v433, %v574
      %v581 = vadd.f32 %v437, %v574
      %v582 = vadd.f32 %v443, %v574
      %v583 = vadd.f32 %v447, %v574
      %v584 = vadd.f32 %v453, %v574
      %v585 = vadd.f32 %v457, %v574
      %v586 = vadd.f32 %v463, %v574
      %v587 = vadd.f32 %v467, %v574
      %v588 = vadd.f32 %v473, %v574
      %v589 = vadd.f32 %v477, %v574
      %v590 = vadd.f32 %v483, %v574
      %v591 = vadd.f32 %v487, %v574
      %592 = vst [vmem:[%s213] sm:$0xff] %v576
      %593 = vst [vmem:[%s213 + $0x8] sm:$0xff] %v577
      %594 = vst [vmem:[%s213 + $0x10] sm:$0xff] %v578
      %595 = vst [vmem:[%s213 + $0x18] sm:$0xff] %v579
      %596 = vst [vmem:[%s213 + $0x20] sm:$0xff] %v580
      %597 = vst [vmem:[%s213 + $0x28] sm:$0xff] %v581
      %598 = vst [vmem:[%s213 + $0x30] sm:$0xff] %v582
      %599 = vst [vmem:[%s213 + $0x38] sm:$0xff] %v583
      %600 = vst [vmem:[%s213 + $0x40] sm:$0xff] %v584
      %601 = vst [vmem:[%s213 + $0x48] sm:$0xff] %v585
      %602 = vst [vmem:[%s213 + $0x50] sm:$0xff] %v586
      %603 = vst [vmem:[%s213 + $0x58] sm:$0xff] %v587
      %604 = vst [vmem:[%s213 + $0x60] sm:$0xff] %v588
      %605 = vst [vmem:[%s213 + $0x68] sm:$0xff] %v589
      %606 = vst [vmem:[%s213 + $0x70] sm:$0xff] %v590
      %607 = vst [vmem:[%s213 + $0x78] sm:$0xff] %v591
      %s608 = smul.u32 16, %s16
      %p609 = scmp.lt.s32.totalorder %s608, 31
      %s610 = scalar_select %p609, %s608, 31
      %s611 = smul.addr %s610, 4
      %s612 = scalar_lea.vmem %s3, %s611
      %s613 = smul.u32 16, %s16
      %p614 = scmp.lt.s32.totalorder %s613, 31
      %s615 = scalar_select %p614, %s613, 31
      %s616 = smul.addr %s615, 8
      %s617 = scalar_lea.vmem %s4, %s616
      // Predicated region
      $region33: #{graph_convolution_bs.3} parent=31 // pred_check
        %p618 = pneg %p102
      $region34: #{graph_convolution_bs.3} parent=31 // pred_check_branch
        %620 = sbr.rel (%p618) target = $region36
      $region35: #{graph_convolution_bs.3} parent=31 // pred_region
        %s621 = smul.u32 16, %s16
      $region36: #{graph_convolution_bs.3} parent=31 // pred_fallthru
        _
      // Predicated region
      $region37: #{graph_convolution_bs.3} parent=31 // pred_check
        %p622 = pneg %p128
      $region38: #{graph_convolution_bs.3} parent=31 // pred_check_branch
        %624 = sbr.rel (%p622) target = $region40
      $region39: #{graph_convolution_bs.3} parent=31 // pred_region
        %s625 = smul.u32 16, %s16
      $region40: #{graph_convolution_bs.3} parent=31 // pred_fallthru
        _
    $region32: #{graph_convolution_bs.3} parent=5 // pred_fallthru
      _
    %p626 = scmp.le.s32.totalorder 2, %s11
    // Predicated region
    $region41: #{graph_convolution_bs.3} parent=5 // pred_check
      %p627 = pneg %p626
    $region42: #{graph_convolution_bs.3} parent=5 // pred_check_branch
      %629 = sbr.rel (%p627) target = $region44
    $region43: #{graph_convolution_bs.3} parent=5 // pred_region
      %s630 = ssub.s32 %s11, 2
      // Predicated region
      $region45: #{graph_convolution_bs.3} parent=43 // pred_check
        %p631 = pneg %p108
      $region46: #{graph_convolution_bs.3} parent=43 // pred_check_branch
        %633 = sbr.rel (%p631) target = $region48
      $region47: #{graph_convolution_bs.3} parent=43 // pred_region
        %s634 = smul.u32 16, %s17
        %p635 = scmp.lt.s32.totalorder %s634, 31
        %s636 = scalar_select %p635, %s634, 31
        %s637 = smul.addr %s636, 4
        %s638 = scalar_lea.vmem %s3, %s637
      $region48: #{graph_convolution_bs.3} parent=43 // pred_fallthru
        _
      // Predicated region
      $region49: #{graph_convolution_bs.3} parent=43 // pred_check
        %p639 = pneg %p134
      $region50: #{graph_convolution_bs.3} parent=43 // pred_check_branch
        %641 = sbr.rel (%p639) target = $region52
      $region51: #{graph_convolution_bs.3} parent=43 // pred_region
        %s642 = smul.u32 16, %s17
        %p643 = scmp.lt.s32.totalorder %s642, 31
        %s644 = scalar_select %p643, %s642, 31
        %s645 = smul.addr %s644, 8
        %s646 = scalar_lea.vmem %s4, %s645
      $region52: #{graph_convolution_bs.3} parent=43 // pred_fallthru
        _
    $region44: #{graph_convolution_bs.3} parent=5 // pred_fallthru
      _
  $region6: #{graph_convolution_bs.3} parent=0 // loop_footer
    %s15 = sadd.s32 1, %s11
  $region7: #{graph_convolution_bs.3} parent=0 // loop_footer_branch
    %10 = sbr.rel target = $region3
  $region8: #{graph_convolution_bs.3} parent=0 // loop_exit
    _

// kernel: graph_convolution_bs.4
$region0: #{graph_convolution_bs.4}
  #allocation0 [shape = 'u32[]', space=smem, size = 0x4, offset = 0x4, fixed_abs, tag = 'smem constant byte address 0x4 - core index']
  #allocation1 [shape = 'u32[144,128]{1,0:T(1,128)}', space=vmem, size = 0x12000, scoped, tag = 'internal scratch']
  #allocation2 [shape = 'f32[128,128]{1,0:T(8,128)}', space=vmem, size = 0x10000, scoped, tag = 'scratch operand']
  %s0 = inlined_call_operand.vmem [shape: bf16[256,256], index: 0, kind: input, shape index: {}]
  %s1 = inlined_call_operand.vmem [shape: bf16[256,128], index: 1, kind: input, shape index: {}]
  %s2 = inlined_call_operand.vmem [shape: f32[256,128], index: 2, kind: input, shape index: {}]
  %s3 = inlined_call_operand.vmem [shape: bf16[256,128], index: 3, kind: output, shape index: {0}]
  %s4 = inlined_call_operand.vmem [shape: f32[2,1,128], index: 4, kind: output, shape index: {1}]
  %s5 = inlined_call_operand.vmem [shape: f32[2,1,128], index: 5, kind: output, shape index: {2}]
  %6 = xla_tuple %s3, %s4, %s5
  %s7 = sld [smem:[#allocation0]]
  $region110: #{graph_convolution_bs.4} parent=0
    _
  %s9 = ssub.s32 1, %s7
  %s10 = scalar_select 0, %s9, %s7
  $region1: #{graph_convolution_bs.4} parent=0
    #allocation3 [shape = 'u8[65536]{0}', space=vmem, size = 0x10000, scoped, tag = 'input window, operand 0']
    loop: start=0, step=1, limit=6
    $region2: #{graph_convolution_bs.4} parent=1 // loop_pre_header
      _
    $region3: #{graph_convolution_bs.4} parent=1 // loop_header
      %s12 = sphi 0, %s16
      %p13 = scmp.ge.s32.totalorder %s12, 6
      %s19 = sphi 0, %s31
      %s20 = sphi 0, %s27
      %s21 = sphi 0, %s19
      %s22 = sphi 0, %s20
      %s23 = sphi 0, %s21
      %s24 = sphi 0, %s22
      %s36 = sphi 0, %s38
      %s39 = sphi 0, %s36
      %s40 = sphi 0, %s39
      %s56 = sphi 0, %s40
      %s62 = sphi 0, %s64
      %s65 = sphi 0, %s62
      %s66 = sphi 0, %s65
      %s82 = sphi 0, %s66
      %s88 = sphi 0, %s90
      %s91 = sphi 0, %s88
      %s92 = sphi 0, %s91
      %s108 = sphi 0, %s92
      %s114 = sphi 0, %s116
      %s117 = sphi 0, %s114
      %s118 = sphi 0, %s117
      %s134 = sphi 0, %s118
      %s140 = sphi 0, %s142
      %s143 = sphi 0, %s140
      %s144 = sphi 0, %s143
      %s160 = sphi 0, %s144
      %s166 = sphi 0, %s168
      %s169 = sphi 0, %s166
      %s170 = sphi 0, %s169
      %s186 = sphi 0, %s170
    $region4: #{graph_convolution_bs.4} parent=1 // loop_header_branch
      %15 = sbr.rel (%p13) target = $region8
    $region5: #{graph_convolution_bs.4} parent=1 // loop_body
      %s17 = ssub.s32 %s12, 1
      %s18 = ssub.s32 %s12, 2
      %s25 = sadd.s32 1, %s20
      %p26 = scmp.ge.s32.totalorder %s25, 2
      %s27 = scalar_select %p26, 0, %s25
      %s28 = sadd.s32 1, %s19
      %s29 = scalar_select %p26, %s28, %s19
      %p30 = scmp.ge.s32.totalorder %s29, 2
      %s31 = scalar_select %p30, 0, %s29
      %s32 = ssub.s32 %s19, %s31
      %s33 = ssub.s32 %s20, %s27
      %s34 = sor.u32 %s32, %s33
      %p35 = scmp.eq.s32.totalorder %s34, 0
      %s37 = sadd.s32 %s36, 1
      %s38 = scalar_select %p35, %s36, %s37
      %p41 = pneg %p35
      %p42 = scmp.eq.s32.totalorder %s12, 3
      %p43 = por %p41, %p42
      %p44 = scmp.ne.s32.totalorder %s36, %s39
      %p45 = scmp.eq.s32.totalorder %s12, 0
      %p46 = por %p44, %p45
      %p47 = scmp.ne.s32.totalorder %s36, %s39
      %p48 = scmp.eq.s32.totalorder %s17, 3
      %p49 = por %p47, %p48
      %p50 = scmp.ne.s32.totalorder %s39, %s40
      %p51 = scmp.eq.s32.totalorder %s17, 0
      %p52 = por %p50, %p51
      %p53 = scmp.ne.s32.totalorder %s39, %s40
      %p54 = scmp.eq.s32.totalorder %s18, 3
      %p55 = por %p53, %p54
      %p57 = scmp.ne.s32.totalorder %s40, %s56
      %p58 = scmp.eq.s32.totalorder %s18, 0
      %p59 = por %p57, %p58
      %s60 = ssub.s32 %s20, %s27
      %p61 = scmp.eq.s32.totalorder %s60, 0
      %s63 = sadd.s32 %s62, 1
      %s64 = scalar_select %p61, %s62, %s63
      %p67 = pneg %p61
      %p68 = scmp.eq.s32.totalorder %s12, 3
      %p69 = por %p67, %p68
      %p70 = scmp.ne.s32.totalorder %s62, %s65
      %p71 = scmp.eq.s32.totalorder %s12, 0
      %p72 = por %p70, %p71
      %p73 = scmp.ne.s32.totalorder %s62, %s65
      %p74 = scmp.eq.s32.totalorder %s17, 3
      %p75 = por %p73, %p74
      %p76 = scmp.ne.s32.totalorder %s65, %s66
      %p77 = scmp.eq.s32.totalorder %s17, 0
      %p78 = por %p76, %p77
      %p79 = scmp.ne.s32.totalorder %s65, %s66
      %p80 = scmp.eq.s32.totalorder %s18, 3
      %p81 = por %p79, %p80
      %p83 = scmp.ne.s32.totalorder %s66, %s82
      %p84 = scmp.eq.s32.totalorder %s18, 0
      %p85 = por %p83, %p84
      %s86 = ssub.s32 %s19, %s31
      %p87 = scmp.eq.s32.totalorder %s86, 0
      %s89 = sadd.s32 %s88, 1
      %s90 = scalar_select %p87, %s88, %s89
      %p93 = pneg %p87
      %p94 = scmp.eq.s32.totalorder %s12, 3
      %p95 = por %p93, %p94
      %p96 = scmp.ne.s32.totalorder %s88, %s91
      %p97 = scmp.eq.s32.totalorder %s12, 0
      %p98 = por %p96, %p97
      %p99 = scmp.ne.s32.totalorder %s88, %s91
      %p100 = scmp.eq.s32.totalorder %s17, 3
      %p101 = por %p99, %p100
      %p102 = scmp.ne.s32.totalorder %s91, %s92
      %p103 = scmp.eq.s32.totalorder %s17, 0
      %p104 = por %p102, %p103
      %p105 = scmp.ne.s32.totalorder %s91, %s92
      %p106 = scmp.eq.s32.totalorder %s18, 3
      %p107 = por %p105, %p106
      %p109 = scmp.ne.s32.totalorder %s92, %s108
      %p110 = scmp.eq.s32.totalorder %s18, 0
      %p111 = por %p109, %p110
      %s112 = ssub.s32 %s19, %s31
      %p113 = scmp.eq.s32.totalorder %s112, 0
      %s115 = sadd.s32 %s114, 1
      %s116 = scalar_select %p113, %s114, %s115
      %p119 = pneg %p113
      %p120 = scmp.eq.s32.totalorder %s12, 3
      %p121 = por %p119, %p120
      %p122 = scmp.ne.s32.totalorder %s114, %s117
      %p123 = scmp.eq.s32.totalorder %s12, 0
      %p124 = por %p122, %p123
      %p125 = scmp.ne.s32.totalorder %s114, %s117
      %p126 = scmp.eq.s32.totalorder %s17, 3
      %p127 = por %p125, %p126
      %p128 = scmp.ne.s32.totalorder %s117, %s118
      %p129 = scmp.eq.s32.totalorder %s17, 0
      %p130 = por %p128, %p129
      %p131 = scmp.ne.s32.totalorder %s117, %s118
      %p132 = scmp.eq.s32.totalorder %s18, 3
      %p133 = por %p131, %p132
      %p135 = scmp.ne.s32.totalorder %s118, %s134
      %p136 = scmp.eq.s32.totalorder %s18, 0
      %p137 = por %p135, %p136
      %s138 = ssub.s32 %s19, %s31
      %p139 = scmp.eq.s32.totalorder %s138, 0
      %s141 = sadd.s32 %s140, 1
      %s142 = scalar_select %p139, %s140, %s141
      %p145 = pneg %p139
      %p146 = scmp.eq.s32.totalorder %s12, 3
      %p147 = por %p145, %p146
      %p148 = scmp.ne.s32.totalorder %s140, %s143
      %p149 = scmp.eq.s32.totalorder %s12, 0
      %p150 = por %p148, %p149
      %p151 = scmp.ne.s32.totalorder %s140, %s143
      %p152 = scmp.eq.s32.totalorder %s17, 3
      %p153 = por %p151, %p152
      %p154 = scmp.ne.s32.totalorder %s143, %s144
      %p155 = scmp.eq.s32.totalorder %s17, 0
      %p156 = por %p154, %p155
      %p157 = scmp.ne.s32.totalorder %s143, %s144
      %p158 = scmp.eq.s32.totalorder %s18, 3
      %p159 = por %p157, %p158
      %p161 = scmp.ne.s32.totalorder %s144, %s160
      %p162 = scmp.eq.s32.totalorder %s18, 0
      %p163 = por %p161, %p162
      %s164 = ssub.s32 %s19, %s31
      %p165 = scmp.eq.s32.totalorder %s164, 0
      %s167 = sadd.s32 %s166, 1
      %s168 = scalar_select %p165, %s166, %s167
      %p171 = pneg %p165
      %p172 = scmp.eq.s32.totalorder %s12, 3
      %p173 = por %p171, %p172
      %p174 = scmp.ne.s32.totalorder %s166, %s169
      %p175 = scmp.eq.s32.totalorder %s12, 0
      %p176 = por %p174, %p175
      %p177 = scmp.ne.s32.totalorder %s166, %s169
      %p178 = scmp.eq.s32.totalorder %s17, 3
      %p179 = por %p177, %p178
      %p180 = scmp.ne.s32.totalorder %s169, %s170
      %p181 = scmp.eq.s32.totalorder %s17, 0
      %p182 = por %p180, %p181
      %p183 = scmp.ne.s32.totalorder %s169, %s170
      %p184 = scmp.eq.s32.totalorder %s18, 3
      %p185 = por %p183, %p184
      %p187 = scmp.ne.s32.totalorder %s170, %s186
      %p188 = scmp.eq.s32.totalorder %s18, 0
      %p189 = por %p187, %p188
      %p190 = scmp.le.s32.totalorder 1, %s12
      %p191 = scmp.lt.s32.totalorder %s12, 5
      %p192 = pnand %p190, %p191
      %p193 = pneg %p192
      // Predicated region
      $region9: #{graph_convolution_bs.4} parent=5 // pred_check
        _
      $region10: #{graph_convolution_bs.4} parent=5 // pred_check_branch
        %195 = sbr.rel (%p192) target = $region12
      $region11: #{graph_convolution_bs.4} parent=5 // pred_region
        %s196 = ssub.s32 %s12, 1
      $region12: #{graph_convolution_bs.4} parent=5 // pred_fallthru
        _
      %p197 = scmp.lt.s32.totalorder %s12, 4
      // Predicated region
      $region13: #{graph_convolution_bs.4} parent=5 // pred_check
        %p198 = pneg %p197
      $region14: #{graph_convolution_bs.4} parent=5 // pred_check_branch
        %200 = sbr.rel (%p198) target = $region16
      $region15: #{graph_convolution_bs.4} parent=5 // pred_region
        // Predicated region
        $region17: #{graph_convolution_bs.4} parent=15 // pred_check
          %p201 = pneg %p46
        $region18: #{graph_convolution_bs.4} parent=15 // pred_check_branch
          %203 = sbr.rel (%p201) target = $region20
        $region19: #{graph_convolution_bs.4} parent=15 // pred_region
          %s204 = sand.u32 %s36, 1
          %s205 = sand.u32 %s36, 1
          %s206 = smul.addr %s205, 64
          %s207 = scalar_lea.vmem [#allocation3], %s206
          %s208 = smul.u32 16, %s19
          %s209 = smul.addr %s208, 2
          %s210 = sadd.s32 %s20, %s209
          %s211 = smul.addr %s210, 4
          %s212 = scalar_lea.vmem %s0, %s211
          // Predicated region
          $region21: #{graph_convolution_bs.4} parent=19 // pred_check
            _
          $region22: #{graph_convolution_bs.4} parent=19 // pred_check_branch
            %214 = sbr.rel (0) target = $region24
          $region23: #{graph_convolution_bs.4} parent=19 // pred_region
            // Predicated region
            $region25: #{graph_convolution_bs.4} parent=23 // pred_check
              _
            $region26: #{graph_convolution_bs.4} parent=23 // pred_check_branch
              %216 = sbr.rel target = $region28
            $region27: #{graph_convolution_bs.4} parent=23 // pred_region
              // Predicated region
              $region40: #{graph_convolution_bs.4} parent=27 // pred_check
                _
              $region41: #{graph_convolution_bs.4} parent=27 // pred_check_branch
                %261 = sbr.rel (0) target = $region43
              $region42: #{graph_convolution_bs.4} parent=27 // pred_region
                loop: start=0, step=1, limit=1
                $region44: #{graph_convolution_bs.4} parent=42 // loop_pre_header
                  _
                $region45: #{graph_convolution_bs.4} parent=42 // loop_header
                  %s263 = sphi 0, %s267
                  %p264 = scmp.ge.s32.totalorder %s263, 1
                  %s268 = sphi %s212, %s212
                  %s269 = sphi %s207, %s207
                $region46: #{graph_convolution_bs.4} parent=42 // loop_header_branch
                  %266 = sbr.rel (%p264) target = $region50
                $region47: #{graph_convolution_bs.4} parent=42 // loop_body
                  _
                $region48: #{graph_convolution_bs.4} parent=42 // loop_footer
                  %s267 = sadd.s32 1, %s263
                $region49: #{graph_convolution_bs.4} parent=42 // loop_footer_branch
                  %262 = sbr.rel target = $region45
                $region50: #{graph_convolution_bs.4} parent=42 // loop_exit
                  _
                loop: start=0, step=1, limit=1
                $region51: #{graph_convolution_bs.4} parent=42 // loop_pre_header
                  _
                $region52: #{graph_convolution_bs.4} parent=42 // loop_header
                  %s272 = sphi 0, %s276
                  %p273 = scmp.ge.s32.totalorder %s272, 1
                  %s277 = sphi %s212, %s212
                  %s278 = sphi %s207, %s207
                $region53: #{graph_convolution_bs.4} parent=42 // loop_header_branch
                  %275 = sbr.rel (%p273) target = $region57
                $region54: #{graph_convolution_bs.4} parent=42 // loop_body
                  %v279 = vld [vmem:[%s277] sm:$0xf]
                  %280 = vst [vmem:[%s278] sm:$0xf] %v279
                  %v281 = vld [vmem:[%s277 + $0x8] sm:$0xf]
                  %282 = vst [vmem:[%s278 + $0x4] sm:$0xf] %v281
                  %v283 = vld [vmem:[%s277 + $0x10] sm:$0xf]
                  %284 = vst [vmem:[%s278 + $0x8] sm:$0xf] %v283
                  %v285 = vld [vmem:[%s277 + $0x18] sm:$0xf]
                  %286 = vst [vmem:[%s278 + $0xc] sm:$0xf] %v285
                  %v287 = vld [vmem:[%s277 + $0x20] sm:$0xf]
                  %288 = vst [vmem:[%s278 + $0x10] sm:$0xf] %v287
                  %v289 = vld [vmem:[%s277 + $0x28] sm:$0xf]
                  %290 = vst [vmem:[%s278 + $0x14] sm:$0xf] %v289
                  %v291 = vld [vmem:[%s277 + $0x30] sm:$0xf]
                  %292 = vst [vmem:[%s278 + $0x18] sm:$0xf] %v291
                  %v293 = vld [vmem:[%s277 + $0x38] sm:$0xf]
                  %294 = vst [vmem:[%s278 + $0x1c] sm:$0xf] %v293
                  %v295 = vld [vmem:[%s277 + $0x40] sm:$0xf]
                  %296 = vst [vmem:[%s278 + $0x20] sm:$0xf] %v295
                  %v297 = vld [vmem:[%s277 + $0x48] sm:$0xf]
                  %298 = vst [vmem:[%s278 + $0x24] sm:$0xf] %v297
                  %v299 = vld [vmem:[%s277 + $0x50] sm:$0xf]
                  %300 = vst [vmem:[%s278 + $0x28] sm:$0xf] %v299
                  %v301 = vld [vmem:[%s277 + $0x58] sm:$0xf]
                  %302 = vst [vmem:[%s278 + $0x2c] sm:$0xf] %v301
                  %v303 = vld [vmem:[%s277 + $0x60] sm:$0xf]
                  %304 = vst [vmem:[%s278 + $0x30] sm:$0xf] %v303
                  %v305 = vld [vmem:[%s277 + $0x68] sm:$0xf]
                  %306 = vst [vmem:[%s278 + $0x34] sm:$0xf] %v305
                  %v307 = vld [vmem:[%s277 + $0x70] sm:$0xf]
                  %308 = vst [vmem:[%s278 + $0x38] sm:$0xf] %v307
                  %v309 = vld [vmem:[%s277 + $0x78] sm:$0xf]
                  %310 = vst [vmem:[%s278 + $0x3c] sm:$0xf] %v309
                $region55: #{graph_convolution_bs.4} parent=42 // loop_footer
                  %s276 = sadd.s32 1, %s272
                $region56: #{graph_convolution_bs.4} parent=42 // loop_footer_branch
                  %271 = sbr.rel target = $region52
                $region57: #{graph_convolution_bs.4} parent=42 // loop_exit
                  _
              $region43: #{graph_convolution_bs.4} parent=27 // pred_fallthru
                _
            $region28: #{graph_convolution_bs.4} parent=23 // pred_fallthru
              _
            // Predicated region
            $region29: #{graph_convolution_bs.4} parent=23 // pred_check
              _
            $region30: #{graph_convolution_bs.4} parent=23 // pred_check_branch
              %218 = sbr.rel (0) target = $region32
            $region31: #{graph_convolution_bs.4} parent=23 // pred_region
              loop: start=0, step=1, limit=1
              $region33: #{graph_convolution_bs.4} parent=31 // loop_pre_header
                _
              $region34: #{graph_convolution_bs.4} parent=31 // loop_header
                %s221 = sphi 0, %s225
                %p222 = scmp.ge.s32.totalorder %s221, 1
                %s226 = sphi %s212, %s212
                %s227 = sphi %s207, %s207
              $region35: #{graph_convolution_bs.4} parent=31 // loop_header_branch
                %224 = sbr.rel (%p222) target = $region39
              $region36: #{graph_convolution_bs.4} parent=31 // loop_body
                %v228 = vld [vmem:[%s226] sm:$0xf]
                %229 = vst [vmem:[%s227] sm:$0xf] %v228
                %v230 = vld [vmem:[%s226 + $0x8] sm:$0xf]
                %231 = vst [vmem:[%s227 + $0x4] sm:$0xf] %v230
                %v232 = vld [vmem:[%s226 + $0x10] sm:$0xf]
                %233 = vst [vmem:[%s227 + $0x8] sm:$0xf] %v232
                %v234 = vld [vmem:[%s226 + $0x18] sm:$0xf]
                %235 = vst [vmem:[%s227 + $0xc] sm:$0xf] %v234
                %v236 = vld [vmem:[%s226 + $0x20] sm:$0xf]
                %237 = vst [vmem:[%s227 + $0x10] sm:$0xf] %v236
                %v238 = vld [vmem:[%s226 + $0x28] sm:$0xf]
                %239 = vst [vmem:[%s227 + $0x14] sm:$0xf] %v238
                %v240 = vld [vmem:[%s226 + $0x30] sm:$0xf]
                %241 = vst [vmem:[%s227 + $0x18] sm:$0xf] %v240
                %v242 = vld [vmem:[%s226 + $0x38] sm:$0xf]
                %243 = vst [vmem:[%s227 + $0x1c] sm:$0xf] %v242
                %v244 = vld [vmem:[%s226 + $0x40] sm:$0xf]
                %245 = vst [vmem:[%s227 + $0x20] sm:$0xf] %v244
                %v246 = vld [vmem:[%s226 + $0x48] sm:$0xf]
                %247 = vst [vmem:[%s227 + $0x24] sm:$0xf] %v246
                %v248 = vld [vmem:[%s226 + $0x50] sm:$0xf]
                %249 = vst [vmem:[%s227 + $0x28] sm:$0xf] %v248
                %v250 = vld [vmem:[%s226 + $0x58] sm:$0xf]
                %251 = vst [vmem:[%s227 + $0x2c] sm:$0xf] %v250
                %v252 = vld [vmem:[%s226 + $0x60] sm:$0xf]
                %253 = vst [vmem:[%s227 + $0x30] sm:$0xf] %v252
                %v254 = vld [vmem:[%s226 + $0x68] sm:$0xf]
                %255 = vst [vmem:[%s227 + $0x34] sm:$0xf] %v254
                %v256 = vld [vmem:[%s226 + $0x70] sm:$0xf]
                %257 = vst [vmem:[%s227 + $0x38] sm:$0xf] %v256
                %v258 = vld [vmem:[%s226 + $0x78] sm:$0xf]
                %259 = vst [vmem:[%s227 + $0x3c] sm:$0xf] %v258
              $region37: #{graph_convolution_bs.4} parent=31 // loop_footer
                %s225 = sadd.s32 1, %s221
              $region38: #{graph_convolution_bs.4} parent=31 // loop_footer_branch
                %220 = sbr.rel target = $region34
              $region39: #{graph_convolution_bs.4} parent=31 // loop_exit
                _
            $region32: #{graph_convolution_bs.4} parent=23 // pred_fallthru
              _
          $region24: #{graph_convolution_bs.4} parent=19 // pred_fallthru
            _
          %311 = vnop
        $region20: #{graph_convolution_bs.4} parent=15 // pred_fallthru
          _
        // Predicated region
        $region58: #{graph_convolution_bs.4} parent=15 // pred_check
          %p312 = pneg %p72
        $region59: #{graph_convolution_bs.4} parent=15 // pred_check_branch
          %314 = sbr.rel (%p312) target = $region61
        $region60: #{graph_convolution_bs.4} parent=15 // pred_region
          %s315 = smul.u32 16, %s20
          %p316 = scmp.lt.s32.totalorder %s315, 31
          %s317 = scalar_select %p316, %s315, 31
          %s318 = smul.addr %s317, 4
          %s319 = scalar_lea.vmem %s1, %s318
          %s320 = smul.u32 16, %s20
        $region61: #{graph_convolution_bs.4} parent=15 // pred_fallthru
          _
        // Predicated region
        $region62: #{graph_convolution_bs.4} parent=15 // pred_check
          %p321 = pneg %p98
        $region63: #{graph_convolution_bs.4} parent=15 // pred_check_branch
          %323 = sbr.rel (%p321) target = $region65
        $region64: #{graph_convolution_bs.4} parent=15 // pred_region
          %s324 = smul.u32 16, %s19
          %p325 = scmp.lt.s32.totalorder %s324, 31
          %s326 = scalar_select %p325, %s324, 31
          %s327 = smul.addr %s326, 8
          %s328 = scalar_lea.vmem %s2, %s327
          %s329 = smul.u32 16, %s19
        $region65: #{graph_convolution_bs.4} parent=15 // pred_fallthru
          _
      $region16: #{graph_convolution_bs.4} parent=5 // pred_fallthru
        _
      %p330 = scmp.le.s32.totalorder 1, %s12
      %p331 = scmp.lt.s32.totalorder %s12, 5
      %p332 = pnand %p330, %p331
      %p333 = pneg %p332
      // Predicated region
      $region66: #{graph_convolution_bs.4} parent=5 // pred_check
        _
      $region67: #{graph_convolution_bs.4} parent=5 // pred_check_branch
        %335 = sbr.rel (%p332) target = $region69
      $region68: #{graph_convolution_bs.4} parent=5 // pred_region
        %s336 = ssub.s32 %s12, 1
        %s337 = sand.u32 %s39, 1
        %s338 = sand.u32 %s39, 1
        %s339 = smul.addr %s338, 64
        %s340 = scalar_lea.vmem [#allocation3], %s339
        // Predicated region
        $region70: #{graph_convolution_bs.4} parent=68 // pred_check
          %p341 = pneg %p52
        $region71: #{graph_convolution_bs.4} parent=68 // pred_check_branch
          %343 = sbr.rel (%p341) target = $region73
        $region72: #{graph_convolution_bs.4} parent=68 // pred_region
          _
        $region73: #{graph_convolution_bs.4} parent=68 // pred_fallthru
          _
        %s344 = sand.u32 %s39, 1
        %s345 = sand.u32 %s39, 1
        %s346 = smul.addr %s345, 64
        %s347 = scalar_lea.vmem [#allocation3], %s346
        %p348 = pneg %p52
        %p349 = pneg %p49
        %s350 = smul.u32 16, %s22
        %p351 = scmp.lt.s32.totalorder %s350, 31
        %s352 = scalar_select %p351, %s350, 31
        %s353 = smul.addr %s352, 4
        %s354 = scalar_lea.vmem %s1, %s353
        %p355 = pneg %p78
        %p356 = pneg %p75
        %s357 = smul.u32 16, %s21
        %p358 = scmp.lt.s32.totalorder %s357, 31
        %s359 = scalar_select %p358, %s357, 31
        %s360 = smul.addr %s359, 8
        %s361 = scalar_lea.vmem %s2, %s360
        %p362 = pneg %p104
        %p363 = pneg %p101
        %p364 = pneg %p130
        %p365 = pneg %p127
        %s366 = smul.u32 16, %s21
        %p367 = scmp.lt.s32.totalorder %s366, 31
        %s368 = scalar_select %p367, %s366, 31
        %s369 = smul.addr %s368, 4
        %s370 = scalar_lea.vmem %s3, %s369
        %p371 = pneg %p156
        %p372 = pneg %p153
        %p373 = scmp.lt.s32.totalorder %s21, 1
        %s374 = scalar_select %p373, %s21, 1
        %s375 = scalar_lea.vmem %s4, %s374
        %p376 = pneg %p182
        %p377 = pneg %p179
        %p378 = scmp.lt.s32.totalorder %s21, 1
        %s379 = scalar_select %p378, %s21, 1
        %s380 = scalar_lea.vmem %s5, %s379
        %s381 = smul.u32 16, %s21
        %s382 = smul.u32 16, %s22
        %p383 = scmp.lt.s32.totalorder %s382, 31
        %s384 = scalar_select %p383, %s382, 31
        %s385 = smul.addr %s384, 4
        %s386 = scalar_lea.vmem %s1, %s385
        %s387 = smul.u32 16, %s22
        %s388 = smul.u32 16, %s21
        %p389 = scmp.lt.s32.totalorder %s388, 31
        %s390 = scalar_select %p389, %s388, 31
        %s391 = smul.addr %s390, 8
        %s392 = scalar_lea.vmem %s2, %s391
        %s393 = smul.u32 16, %s21
        %s394 = smul.u32 16, %s21
        %p395 = scmp.lt.s32.totalorder %s394, 31
        %s396 = scalar_select %p395, %s394, 31
        %s397 = smul.addr %s396, 4
        %s398 = scalar_lea.vmem %s3, %s397
        %s399 = smul.u32 16, %s21
        %p400 = scmp.lt.s32.totalorder %s21, 1
        %s401 = scalar_select %p400, %s21, 1
        %s402 = scalar_lea.vmem %s4, %s401
        %p403 = scmp.lt.s32.totalorder %s21, 1
        %s404 = scalar_select %p403, %s21, 1
        %s405 = scalar_lea.vmem %s5, %s404
        %p407 = scmp.eq.s32.totalorder %s22, 0
        // Predicated region
        $region74: #{graph_convolution_bs.4} parent=68 // pred_check
          %p408 = pneg %p407
        $region75: #{graph_convolution_bs.4} parent=68 // pred_check_branch
          %410 = sbr.rel (%p408) target = $region77
        $region76: #{graph_convolution_bs.4} parent=68 // pred_region
          %411 = vst [vmem:[#allocation2] sm:$0xff] 0.0
          %412 = vst [vmem:[#allocation2 + $0x8] sm:$0xff] 0.0
          %413 = vst [vmem:[#allocation2 + $0x10] sm:$0xff] 0.0
          %414 = vst [vmem:[#allocation2 + $0x18] sm:$0xff] 0.0
          %415 = vst [vmem:[#allocation2 + $0x20] sm:$0xff] 0.0
          %416 = vst [vmem:[#allocation2 + $0x28] sm:$0xff] 0.0
          %417 = vst [vmem:[#allocation2 + $0x30] sm:$0xff] 0.0
          %418 = vst [vmem:[#allocation2 + $0x38] sm:$0xff] 0.0
          %419 = vst [vmem:[#allocation2 + $0x40] sm:$0xff] 0.0
          %420 = vst [vmem:[#allocation2 + $0x48] sm:$0xff] 0.0
          %421 = vst [vmem:[#allocation2 + $0x50] sm:$0xff] 0.0
          %422 = vst [vmem:[#allocation2 + $0x58] sm:$0xff] 0.0
          %423 = vst [vmem:[#allocation2 + $0x60] sm:$0xff] 0.0
          %424 = vst [vmem:[#allocation2 + $0x68] sm:$0xff] 0.0
          %425 = vst [vmem:[#allocation2 + $0x70] sm:$0xff] 0.0
          %426 = vst [vmem:[#allocation2 + $0x78] sm:$0xff] 0.0
        $region77: #{graph_convolution_bs.4} parent=68 // pred_fallthru
          _
        %v427 = vld [vmem:[#allocation2] sm:$0xff]
        %v428 = vld [vmem:[#allocation2 + $0x8] sm:$0xff]
        %v429 = vld [vmem:[#allocation2 + $0x10] sm:$0xff]
        %v430 = vld [vmem:[#allocation2 + $0x18] sm:$0xff]
        %v431 = vld [vmem:[#allocation2 + $0x20] sm:$0xff]
        %v432 = vld [vmem:[#allocation2 + $0x28] sm:$0xff]
        %v433 = vld [vmem:[#allocation2 + $0x30] sm:$0xff]
        %v434 = vld [vmem:[#allocation2 + $0x38] sm:$0xff]
        %v435 = vld [vmem:[#allocation2 + $0x40] sm:$0xff]
        %v436 = vld [vmem:[#allocation2 + $0x48] sm:$0xff]
        %v437 = vld [vmem:[#allocation2 + $0x50] sm:$0xff]
        %v438 = vld [vmem:[#allocation2 + $0x58] sm:$0xff]
        %v439 = vld [vmem:[#allocation2 + $0x60] sm:$0xff]
        %v440 = vld [vmem:[#allocation2 + $0x68] sm:$0xff]
        %v441 = vld [vmem:[#allocation2 + $0x70] sm:$0xff]
        %v442 = vld [vmem:[#allocation2 + $0x78] sm:$0xff]
        %v443 = vld [vmem:[%s340] sm:$0xf]
        %v444 = vld [vmem:[%s340 + $0x4] sm:$0xf]
        %v445 = vld [vmem:[%s340 + $0x8] sm:$0xf]
        %v446 = vld [vmem:[%s340 + $0xc] sm:$0xf]
        %v447 = vld [vmem:[%s340 + $0x10] sm:$0xf]
        %v448 = vld [vmem:[%s340 + $0x14] sm:$0xf]
        %v449 = vld [vmem:[%s340 + $0x18] sm:$0xf]
        %v450 = vld [vmem:[%s340 + $0x1c] sm:$0xf]
        %v451 = vld [vmem:[%s340 + $0x20] sm:$0xf]
        %v452 = vld [vmem:[%s340 + $0x24] sm:$0xf]
        %v453 = vld [vmem:[%s340 + $0x28] sm:$0xf]
        %v454 = vld [vmem:[%s340 + $0x2c] sm:$0xf]
        %v455 = vld [vmem:[%s340 + $0x30] sm:$0xf]
        %v456 = vld [vmem:[%s340 + $0x34] sm:$0xf]
        %v457 = vld [vmem:[%s340 + $0x38] sm:$0xf]
        %v458 = vld [vmem:[%s340 + $0x3c] sm:$0xf]
        %v459 = vld [vmem:[%s386] sm:$0xf]
        %v460 = vld [vmem:[%s386 + $0x4] sm:$0xf]
        %v461 = vld [vmem:[%s386 + $0x8] sm:$0xf]
        %v462 = vld [vmem:[%s386 + $0xc] sm:$0xf]
        %v463 = vld [vmem:[%s386 + $0x10] sm:$0xf]
        %v464 = vld [vmem:[%s386 + $0x14] sm:$0xf]
        %v465 = vld [vmem:[%s386 + $0x18] sm:$0xf]
        %v466 = vld [vmem:[%s386 + $0x1c] sm:$0xf]
        %v467 = vld [vmem:[%s386 + $0x20] sm:$0xf]
        %v468 = vld [vmem:[%s386 + $0x24] sm:$0xf]
        %v469 = vld [vmem:[%s386 + $0x28] sm:$0xf]
        %v470 = vld [vmem:[%s386 + $0x2c] sm:$0xf]
        %v471 = vld [vmem:[%s386 + $0x30] sm:$0xf]
        %v472 = vld [vmem:[%s386 + $0x34] sm:$0xf]
        %v473 = vld [vmem:[%s386 + $0x38] sm:$0xf]
        %v474 = vld [vmem:[%s386 + $0x3c] sm:$0xf]
        %v491 = vunpack.c.l.b16 %v443
        %v492 = vunpack.c.l.b16 %v444
        %v493 = vunpack.c.l.b16 %v445
        %v494 = vunpack.c.l.b16 %v446
        %v495 = vunpack.c.l.b16 %v447
        %v496 = vunpack.c.l.b16 %v448
        %v497 = vunpack.c.l.b16 %v449
        %v498 = vunpack.c.l.b16 %v450
        %v499 = vunpack.c.l.b16 %v451
        %v500 = vunpack.c.l.b16 %v452
        %v501 = vunpack.c.l.b16 %v453
        %v502 = vunpack.c.l.b16 %v454
        %v503 = vunpack.c.l.b16 %v455
        %v504 = vunpack.c.l.b16 %v456
        %v505 = vunpack.c.l.b16 %v457
        %v506 = vunpack.c.l.b16 %v458
        %v507 = vpack.c.b16 %v492, %v491
        %v508 = vpack.c.b16 %v494, %v493
        %v509 = vpack.c.b16 %v496, %v495
        %v510 = vpack.c.b16 %v498, %v497
        %v511 = vpack.c.b16 %v500, %v499
        %v512 = vpack.c.b16 %v502, %v501
        %v513 = vpack.c.b16 %v504, %v503
        %v514 = vpack.c.b16 %v506, %v505
        %v539 = vunpack.c.l.b16 %v459
        %v540 = vunpack.c.l.b16 %v460
        %v541 = vunpack.c.l.b16 %v461
        %v542 = vunpack.c.l.b16 %v462
        %v543 = vunpack.c.l.b16 %v463
        %v544 = vunpack.c.l.b16 %v464
        %v545 = vunpack.c.l.b16 %v465
        %v546 = vunpack.c.l.b16 %v466
        %v547 = vunpack.c.l.b16 %v467
        %v548 = vunpack.c.l.b16 %v468
        %v549 = vunpack.c.l.b16 %v469
        %v550 = vunpack.c.l.b16 %v470
        %v551 = vunpack.c.l.b16 %v471
        %v552 = vunpack.c.l.b16 %v472
        %v553 = vunpack.c.l.b16 %v473
        %v554 = vunpack.c.l.b16 %v474
        %v555 = vpack.c.b16 %v540, %v539
        %v556 = vpack.c.b16 %v542, %v541
        %v557 = vpack.c.b16 %v544, %v543
        %v558 = vpack.c.b16 %v546, %v545
        %v559 = vpack.c.b16 %v548, %v547
        %v560 = vpack.c.b16 %v550, %v549
        %v561 = vpack.c.b16 %v552, %v551
        %v562 = vpack.c.b16 %v554, %v553
        %571 = vmatprep.subr.bf16.mxu0 0
        %572 = vmatpush1.bf16.msra.mxu0 %v555
        %573 = vmatprep.subr.bf16.mxu0 0
        %574 = vmatpush1.bf16.msra.mxu0 %v556
        %575 = vmatprep.subr.bf16.mxu0 0
        %576 = vmatpush1.bf16.msra.mxu0 %v557
        %577 = vmatprep.subr.bf16.mxu0 0
        %578 = vmatpush1.bf16.msra.mxu0 %v558
        %579 = vmatprep.subr.bf16.mxu0 0
        %580 = vmatpush1.bf16.msra.mxu0 %v559
        %581 = vmatprep.subr.bf16.mxu0 0
        %582 = vmatpush1.bf16.msra.mxu0 %v560
        %583 = vmatprep.subr.bf16.mxu0 0
        %584 = vmatpush1.bf16.msra.mxu0 %v561
        %585 = vmatprep.subr.bf16.mxu0 0
        %586 = vmatpush1.bf16.msra.mxu0 %v562
        %587 = vmatprep.subr.bf16.mxu0 0
        %588 = vmatpush1.bf16.msra.mxu0 0
        %589 = vmatprep.subr.bf16.mxu0 0
        %590 = vmatpush1.bf16.msra.mxu0 0
        %591 = vmatprep.subr.bf16.mxu0 0
        %592 = vmatpush1.bf16.msra.mxu0 0
        %593 = vmatprep.subr.bf16.mxu0 0
        %594 = vmatpush1.bf16.msra.mxu0 0
        %595 = vmatprep.subr.bf16.mxu0 0
        %596 = vmatpush1.bf16.msra.mxu0 0
        %597 = vmatprep.subr.bf16.mxu0 0
        %598 = vmatpush1.bf16.msra.mxu0 0
        %599 = vmatprep.subr.bf16.mxu0 0
        %600 = vmatpush1.bf16.msra.mxu0 0
        %601 = vmatprep.subr.bf16.mxu0 0
        %602 = vmatpush1.bf16.msra.mxu0 0
        %603 = vmatprep.mubr.bf16.mxu0 0
        %604 = vmatmul.mubr.bf16.gmra.mrb[0].mxu0 %v507
        %v605 = vpop.f32.mrb[0].mxu0
        %v606 = vadd.f32 0.0, %v605
        %v607 = vpop.f32.mrb[0].mxu0
        %v608 = vpop.f32.mrb[0].mxu0
        %v609 = vadd.f32 0.0, %v608
        %v610 = vpop.f32.mrb[0].mxu0
        %611 = vmatprep.mubr.bf16.mxu0 0
        %612 = vmatmul.mubr.bf16.gmra.mrb[0].mxu0 %v508
        %v613 = vpop.f32.mrb[0].mxu0
        %v614 = vadd.f32 0.0, %v613
        %v615 = vpop.f32.mrb[0].mxu0
        %v616 = vpop.f32.mrb[0].mxu0
        %v617 = vadd.f32 0.0, %v616
        %v618 = vpop.f32.mrb[0].mxu0
        %619 = vmatprep.mubr.bf16.mxu0 0
        %620 = vmatmul.mubr.bf16.gmra.mrb[0].mxu0 %v509
        %v621 = vpop.f32.mrb[0].mxu0
        %v622 = vadd.f32 0.0, %v621
        %v623 = vpop.f32.mrb[0].mxu0
        %v624 = vpop.f32.mrb[0].mxu0
        %v625 = vadd.f32 0.0, %v624
        %v626 = vpop.f32.mrb[0].mxu0
        %627 = vmatprep.mubr.bf16.mxu0 0
        %628 = vmatmul.mubr.bf16.gmra.mrb[0].mxu0 %v510
        %v629 = vpop.f32.mrb[0].mxu0
        %v630 = vadd.f32 0.0, %v629
        %v631 = vpop.f32.mrb[0].mxu0
        %v632 = vpop.f32.mrb[0].mxu0
        %v633 = vadd.f32 0.0, %v632
        %v634 = vpop.f32.mrb[0].mxu0
        %635 = vmatprep.mubr.bf16.mxu0 0
        %636 = vmatmul.mubr.bf16.gmra.mrb[0].mxu0 %v511
        %v637 = vpop.f32.mrb[0].mxu0
        %v638 = vadd.f32 0.0, %v637
        %v639 = vpop.f32.mrb[0].mxu0
        %v640 = vpop.f32.mrb[0].mxu0
        %v641 = vadd.f32 0.0, %v640
        %v642 = vpop.f32.mrb[0].mxu0
        %643 = vmatprep.mubr.bf16.mxu0 0
        %644 = vmatmul.mubr.bf16.gmra.mrb[0].mxu0 %v512
        %v645 = vpop.f32.mrb[0].mxu0
        %v646 = vadd.f32 0.0, %v645
        %v647 = vpop.f32.mrb[0].mxu0
        %v648 = vpop.f32.mrb[0].mxu0
        %v649 = vadd.f32 0.0, %v648
        %v650 = vpop.f32.mrb[0].mxu0
        %651 = vmatprep.mubr.bf16.mxu0 0
        %652 = vmatmul.mubr.bf16.gmra.mrb[0].mxu0 %v513
        %v653 = vpop.f32.mrb[0].mxu0
        %v654 = vadd.f32 0.0, %v653
        %v655 = vpop.f32.mrb[0].mxu0
        %v656 = vpop.f32.mrb[0].mxu0
        %v657 = vadd.f32 0.0, %v656
        %v658 = vpop.f32.mrb[0].mxu0
        %659 = vmatprep.mubr.bf16.mxu0 0
        %660 = vmatmul.mubr.bf16.gmra.mrb[0].mxu0 %v514
        %v661 = vpop.f32.mrb[0].mxu0
        %v662 = vadd.f32 0.0, %v661
        %v663 = vpop.f32.mrb[0].mxu0
        %v664 = vpop.f32.mrb[0].mxu0
        %v665 = vadd.f32 0.0, %v664
        %v666 = vpop.f32.mrb[0].mxu0
        %667 = vdwg.mxu0
        %v668 = vadd.f32 %v427, %v606
        %v669 = vadd.f32 %v428, %v609
        %v670 = vadd.f32 %v429, %v614
        %v671 = vadd.f32 %v430, %v617
        %v672 = vadd.f32 %v431, %v622
        %v673 = vadd.f32 %v432, %v625
        %v674 = vadd.f32 %v433, %v630
        %v675 = vadd.f32 %v434, %v633
        %v676 = vadd.f32 %v435, %v638
        %v677 = vadd.f32 %v436, %v641
        %v678 = vadd.f32 %v437, %v646
        %v679 = vadd.f32 %v438, %v649
        %v680 = vadd.f32 %v439, %v654
        %v681 = vadd.f32 %v440, %v657
        %v682 = vadd.f32 %v441, %v662
        %v683 = vadd.f32 %v442, %v665
        %684 = vst [vmem:[#allocation2] sm:$0xff] %v668
        %685 = vst [vmem:[#allocation2 + $0x8] sm:$0xff] %v669
        %686 = vst [vmem:[#allocation2 + $0x10] sm:$0xff] %v670
        %687 = vst [vmem:[#allocation2 + $0x18] sm:$0xff] %v671
        %688 = vst [vmem:[#allocation2 + $0x20] sm:$0xff] %v672
        %689 = vst [vmem:[#allocation2 + $0x28] sm:$0xff] %v673
        %690 = vst [vmem:[#allocation2 + $0x30] sm:$0xff] %v674
        %691 = vst [vmem:[#allocation2 + $0x38] sm:$0xff] %v675
        %692 = vst [vmem:[#allocation2 + $0x40] sm:$0xff] %v676
        %693 = vst [vmem:[#allocation2 + $0x48] sm:$0xff] %v677
        %694 = vst [vmem:[#allocation2 + $0x50] sm:$0xff] %v678
        %695 = vst [vmem:[#allocation2 + $0x58] sm:$0xff] %v679
        %696 = vst [vmem:[#allocation2 + $0x60] sm:$0xff] %v680
        %697 = vst [vmem:[#allocation2 + $0x68] sm:$0xff] %v681
        %698 = vst [vmem:[#allocation2 + $0x70] sm:$0xff] %v682
        %699 = vst [vmem:[#allocation2 + $0x78] sm:$0xff] %v683
        %p700 = scmp.eq.s32.totalorder %s22, 1
        // Predicated region
        $region78: #{graph_convolution_bs.4} parent=68 // pred_check
          %p701 = pneg %p700
        $region79: #{graph_convolution_bs.4} parent=68 // pred_check_branch
          %703 = sbr.rel (%p701) target = $region81
        $region80: #{graph_convolution_bs.4} parent=68 // pred_region
          %v704 = vld [vmem:[#allocation2] sm:$0xff]
          %v705 = vld [vmem:[#allocation2 + $0x8] sm:$0xff]
          %v706 = vld [vmem:[#allocation2 + $0x10] sm:$0xff]
          %v707 = vld [vmem:[#allocation2 + $0x18] sm:$0xff]
          %v708 = vld [vmem:[#allocation2 + $0x20] sm:$0xff]
          %v709 = vld [vmem:[#allocation2 + $0x28] sm:$0xff]
          %v710 = vld [vmem:[#allocation2 + $0x30] sm:$0xff]
          %v711 = vld [vmem:[#allocation2 + $0x38] sm:$0xff]
          %v712 = vld [vmem:[#allocation2 + $0x40] sm:$0xff]
          %v713 = vld [vmem:[#allocation2 + $0x48] sm:$0xff]
          %v714 = vld [vmem:[#allocation2 + $0x50] sm:$0xff]
          %v715 = vld [vmem:[#allocation2 + $0x58] sm:$0xff]
          %v716 = vld [vmem:[#allocation2 + $0x60] sm:$0xff]
          %v717 = vld [vmem:[#allocation2 + $0x68] sm:$0xff]
          %v718 = vld [vmem:[#allocation2 + $0x70] sm:$0xff]
          %v719 = vld [vmem:[#allocation2 + $0x78] sm:$0xff]
          %v720 = vld [vmem:[%s392] sm:$0xff]
          %v721 = vld [vmem:[%s392 + $0x8] sm:$0xff]
          %v722 = vld [vmem:[%s392 + $0x10] sm:$0xff]
          %v723 = vld [vmem:[%s392 + $0x18] sm:$0xff]
          %v724 = vld [vmem:[%s392 + $0x20] sm:$0xff]
          %v725 = vld [vmem:[%s392 + $0x28] sm:$0xff]
          %v726 = vld [vmem:[%s392 + $0x30] sm:$0xff]
          %v727 = vld [vmem:[%s392 + $0x38] sm:$0xff]
          %v728 = vld [vmem:[%s392 + $0x40] sm:$0xff]
          %v729 = vld [vmem:[%s392 + $0x48] sm:$0xff]
          %v730 = vld [vmem:[%s392 + $0x50] sm:$0xff]
          %v731 = vld [vmem:[%s392 + $0x58] sm:$0xff]
          %v732 = vld [vmem:[%s392 + $0x60] sm:$0xff]
          %v733 = vld [vmem:[%s392 + $0x68] sm:$0xff]
          %v734 = vld [vmem:[%s392 + $0x70] sm:$0xff]
          %v735 = vld [vmem:[%s392 + $0x78] sm:$0xff]
          %v736 = vadd.f32 %v704, %v720
          %v737 = vadd.f32 %v705, %v721
          %v738 = vadd.f32 %v706, %v722
          %v739 = vadd.f32 %v707, %v723
          %v740 = vadd.f32 %v708, %v724
          %v741 = vadd.f32 %v709, %v725
          %v742 = vadd.f32 %v710, %v726
          %v743 = vadd.f32 %v711, %v727
          %v744 = vadd.f32 %v712, %v728
          %v745 = vadd.f32 %v713, %v729
          %v746 = vadd.f32 %v714, %v730
          %v747 = vadd.f32 %v715, %v731
          %v748 = vadd.f32 %v716, %v732
          %v749 = vadd.f32 %v717, %v733
          %v750 = vadd.f32 %v718, %v734
          %v751 = vadd.f32 %v719, %v735
          %v752 = vlaneseq
          %v753 = vshrl.u32 %v752, 7
          %v754 = vadd.s32 %v753, 8
          %v755 = vadd.s32 %v753, 16
          %v756 = vadd.s32 %v753, 24
          %v757 = vadd.s32 %v753, 32
          %v758 = vadd.s32 %v753, 40
          %v759 = vadd.s32 %v753, 48
          %v760 = vadd.s32 %v753, 56
          %v761 = vadd.s32 %v753, 64
          %v762 = vadd.s32 %v753, 72
          %v763 = vadd.s32 %v753, 80
          %v764 = vadd.s32 %v753, 88
          %v765 = vadd.s32 %v753, 96
          %v766 = vadd.s32 %v753, 104
          %v767 = vadd.s32 %v753, 112
          %v768 = vadd.s32 %v753, 120
          %s769 = smul.u32 %s21, 128
          %v770 = vstv %s769
          %v771 = vadd.s32 %v753, %v770
          %v772 = vadd.s32 %v754, %v770
          %v773 = vadd.s32 %v755, %v770
          %v774 = vadd.s32 %v756, %v770
          %v775 = vadd.s32 %v757, %v770
          %v776 = vadd.s32 %v758, %v770
          %v777 = vadd.s32 %v759, %v770
          %v778 = vadd.s32 %v760, %v770
          %v779 = vadd.s32 %v761, %v770
          %v780 = vadd.s32 %v762, %v770
          %v781 = vadd.s32 %v763, %v770
          %v782 = vadd.s32 %v764, %v770
          %v783 = vadd.s32 %v765, %v770
          %v784 = vadd.s32 %v766, %v770
          %v785 = vadd.s32 %v767, %v770
          %v786 = vadd.s32 %v768, %v770
          %vm787 = vcmp.lt.s32.totalorder %v771, 256
          %vm788 = vcmp.lt.s32.totalorder %v772, 256
          %vm789 = vcmp.lt.s32.totalorder %v773, 256
          %vm790 = vcmp.lt.s32.totalorder %v774, 256
          %vm791 = vcmp.lt.s32.totalorder %v775, 256
          %vm792 = vcmp.lt.s32.totalorder %v776, 256
          %vm793 = vcmp.lt.s32.totalorder %v777, 256
          %vm794 = vcmp.lt.s32.totalorder %v778, 256
          %vm795 = vcmp.lt.s32.totalorder %v779, 256
          %vm796 = vcmp.lt.s32.totalorder %v780, 256
          %vm797 = vcmp.lt.s32.totalorder %v781, 256
          %vm798 = vcmp.lt.s32.totalorder %v782, 256
          %vm799 = vcmp.lt.s32.totalorder %v783, 256
          %vm800 = vcmp.lt.s32.totalorder %v784, 256
          %vm801 = vcmp.lt.s32.totalorder %v785, 256
          %vm802 = vcmp.lt.s32.totalorder %v786, 256
          %v803 = vsel %vm787, %v736, 0.0
          %v804 = vsel %vm788, %v737, 0.0
          %v805 = vsel %vm789, %v738, 0.0
          %v806 = vsel %vm790, %v739, 0.0
          %v807 = vsel %vm791, %v740, 0.0
          %v808 = vsel %vm792, %v741, 0.0
          %v809 = vsel %vm793, %v742, 0.0
          %v810 = vsel %vm794, %v743, 0.0
          %v811 = vsel %vm795, %v744, 0.0
          %v812 = vsel %vm796, %v745, 0.0
          %v813 = vsel %vm797, %v746, 0.0
          %v814 = vsel %vm798, %v747, 0.0
          %v815 = vsel %vm799, %v748, 0.0
          %v816 = vsel %vm800, %v749, 0.0
          %v817 = vsel %vm801, %v750, 0.0
          %v818 = vsel %vm802, %v751, 0.0
          %v819 = vadd.f32 %v803, %v804
          %v820 = vadd.f32 %v819, %v805
          %v821 = vadd.f32 %v820, %v806
          %v822 = vadd.f32 %v821, %v807
          %v823 = vadd.f32 %v822, %v808
          %v824 = vadd.f32 %v823, %v809
          %v825 = vadd.f32 %v824, %v810
          %v826 = vadd.f32 %v825, %v811
          %v827 = vadd.f32 %v826, %v812
          %v828 = vadd.f32 %v827, %v813
          %v829 = vadd.f32 %v828, %v814
          %v830 = vadd.f32 %v829, %v815
          %v831 = vadd.f32 %v830, %v816
          %v832 = vadd.f32 %v831, %v817
          %v833 = vadd.f32 %v832, %v818
          %v834 = vrot.slane %v833, 4
          %v835 = vadd.f32 %v833, %v834
          %v836 = vrot.slane %v835, 2
          %v837 = vadd.f32 %v835, %v836
          %v838 = vrot.slane %v837, 1
          %v839 = vadd.f32 %v837, %v838
          %840 = vst [vmem:[%s402] sm:$0x1] %v839
          %v841 = vmul.f32 %v803, %v803
          %v842 = vmul.f32 %v804, %v804
          %v843 = vmul.f32 %v805, %v805
          %v844 = vmul.f32 %v806, %v806
          %v845 = vmul.f32 %v807, %v807
          %v846 = vmul.f32 %v808, %v808
          %v847 = vmul.f32 %v809, %v809
          %v848 = vmul.f32 %v810, %v810
          %v849 = vmul.f32 %v811, %v811
          %v850 = vmul.f32 %v812, %v812
          %v851 = vmul.f32 %v813, %v813
          %v852 = vmul.f32 %v814, %v814
          %v853 = vmul.f32 %v815, %v815
          %v854 = vmul.f32 %v816, %v816
          %v855 = vmul.f32 %v817, %v817
          %v856 = vmul.f32 %v818, %v818
          %v857 = vadd.f32 %v841, %v842
          %v858 = vadd.f32 %v857, %v843
          %v859 = vadd.f32 %v858, %v844
          %v860 = vadd.f32 %v859, %v845
          %v861 = vadd.f32 %v860, %v846
          %v862 = vadd.f32 %v861, %v847
          %v863 = vadd.f32 %v862, %v848
          %v864 = vadd.f32 %v863, %v849
          %v865 = vadd.f32 %v864, %v850
          %v866 = vadd.f32 %v865, %v851
          %v867 = vadd.f32 %v866, %v852
          %v868 = vadd.f32 %v867, %v853
          %v869 = vadd.f32 %v868, %v854
          %v870 = vadd.f32 %v869, %v855
          %v871 = vadd.f32 %v870, %v856
          %v872 = vrot.slane %v871, 4
          %v873 = vadd.f32 %v871, %v872
          %v874 = vrot.slane %v873, 2
          %v875 = vadd.f32 %v873, %v874
          %v876 = vrot.slane %v875, 1
          %v877 = vadd.f32 %v875, %v876
          %878 = vst [vmem:[%s405] sm:$0x1] %v877
          %v879 = vpack.c.bf16 %v737, %v736
          %v880 = vpack.c.bf16 %v739, %v738
          %v881 = vpack.c.bf16 %v741, %v740
          %v882 = vpack.c.bf16 %v743, %v742
          %v883 = vpack.c.bf16 %v745, %v744
          %v884 = vpack.c.bf16 %v747, %v746
          %v885 = vpack.c.bf16 %v749, %v748
          %v886 = vpack.c.bf16 %v751, %v750
          %v895 = vunpack.c.l.b16 %v879
          %v896 = vunpack.c.h.b16 %v879
          %v897 = vunpack.c.l.b16 %v880
          %v898 = vunpack.c.h.b16 %v880
          %v899 = vunpack.c.l.b16 %v881
          %v900 = vunpack.c.h.b16 %v881
          %v901 = vunpack.c.l.b16 %v882
          %v902 = vunpack.c.h.b16 %v882
          %v903 = vunpack.c.l.b16 %v883
          %v904 = vunpack.c.h.b16 %v883
          %v905 = vunpack.c.l.b16 %v884
          %v906 = vunpack.c.h.b16 %v884
          %v907 = vunpack.c.l.b16 %v885
          %v908 = vunpack.c.h.b16 %v885
          %v909 = vunpack.c.l.b16 %v886
          %v910 = vunpack.c.h.b16 %v886
          %v911 = vpack.c.b16 %v895, %v895
          %v912 = vpack.c.b16 %v896, %v896
          %v913 = vpack.c.b16 %v897, %v897
          %v914 = vpack.c.b16 %v898, %v898
          %v915 = vpack.c.b16 %v899, %v899
          %v916 = vpack.c.b16 %v900, %v900
          %v917 = vpack.c.b16 %v901, %v901
          %v918 = vpack.c.b16 %v902, %v902
          %v919 = vpack.c.b16 %v903, %v903
          %v920 = vpack.c.b16 %v904, %v904
          %v921 = vpack.c.b16 %v905, %v905
          %v922 = vpack.c.b16 %v906, %v906
          %v923 = vpack.c.b16 %v907, %v907
          %v924 = vpack.c.b16 %v908, %v908
          %v925 = vpack.c.b16 %v909, %v909
          %v926 = vpack.c.b16 %v910, %v910
          %943 = vst [vmem:[%s398] sm:$0xf] %v911
          %944 = vst [vmem:[%s398 + $0x4] sm:$0xf] %v912
          %945 = vst [vmem:[%s398 + $0x8] sm:$0xf] %v913
          %946 = vst [vmem:[%s398 + $0xc] sm:$0xf] %v914
          %947 = vst [vmem:[%s398 + $0x10] sm:$0xf] %v915
          %948 = vst [vmem:[%s398 + $0x14] sm:$0xf] %v916
          %949 = vst [vmem:[%s398 + $0x18] sm:$0xf] %v917
          %950 = vst [vmem:[%s398 + $0x1c] sm:$0xf] %v918
          %951 = vst [vmem:[%s398 + $0x20] sm:$0xf] %v919
          %952 = vst [vmem:[%s398 + $0x24] sm:$0xf] %v920
          %953 = vst [vmem:[%s398 + $0x28] sm:$0xf] %v921
          %954 = vst [vmem:[%s398 + $0x2c] sm:$0xf] %v922
          %955 = vst [vmem:[%s398 + $0x30] sm:$0xf] %v923
          %956 = vst [vmem:[%s398 + $0x34] sm:$0xf] %v924
          %957 = vst [vmem:[%s398 + $0x38] sm:$0xf] %v925
          %958 = vst [vmem:[%s398 + $0x3c] sm:$0xf] %v926
        $region81: #{graph_convolution_bs.4} parent=68 // pred_fallthru
          _
        %s959 = smul.u32 16, %s21
        %p960 = scmp.lt.s32.totalorder %s959, 31
        %s961 = scalar_select %p960, %s959, 31
        %s962 = smul.addr %s961, 4
        %s963 = scalar_lea.vmem %s3, %s962
        %p964 = scmp.lt.s32.totalorder %s21, 1
        %s965 = scalar_select %p964, %s21, 1
        %s966 = scalar_lea.vmem %s4, %s965
        %p967 = scmp.lt.s32.totalorder %s21, 1
        %s968 = scalar_select %p967, %s21, 1
        %s969 = scalar_lea.vmem %s5, %s968
        // Predicated region
        $region82: #{graph_convolution_bs.4} parent=68 // pred_check
          %p970 = pneg %p127
        $region83: #{graph_convolution_bs.4} parent=68 // pred_check_branch
          %972 = sbr.rel (%p970) target = $region85
        $region84: #{graph_convolution_bs.4} parent=68 // pred_region
          %s973 = smul.u32 16, %s21
        $region85: #{graph_convolution_bs.4} parent=68 // pred_fallthru
          _
        // Predicated region
        $region86: #{graph_convolution_bs.4} parent=68 // pred_check
          %p974 = pneg %p153
        $region87: #{graph_convolution_bs.4} parent=68 // pred_check_branch
          %976 = sbr.rel (%p974) target = $region89
        $region88: #{graph_convolution_bs.4} parent=68 // pred_region
          _
        $region89: #{graph_convolution_bs.4} parent=68 // pred_fallthru
          _
        // Predicated region
        $region90: #{graph_convolution_bs.4} parent=68 // pred_check
          %p977 = pneg %p179
        $region91: #{graph_convolution_bs.4} parent=68 // pred_check_branch
          %979 = sbr.rel (%p977) target = $region93
        $region92: #{graph_convolution_bs.4} parent=68 // pred_region
          _
        $region93: #{graph_convolution_bs.4} parent=68 // pred_fallthru
          _
      $region69: #{graph_convolution_bs.4} parent=5 // pred_fallthru
        _
      %p980 = scmp.le.s32.totalorder 2, %s12
      // Predicated region
      $region94: #{graph_convolution_bs.4} parent=5 // pred_check
        %p981 = pneg %p980
      $region95: #{graph_convolution_bs.4} parent=5 // pred_check_branch
        %983 = sbr.rel (%p981) target = $region97
      $region96: #{graph_convolution_bs.4} parent=5 // pred_region
        %s984 = ssub.s32 %s12, 2
        // Predicated region
        $region98: #{graph_convolution_bs.4} parent=96 // pred_check
          %p985 = pneg %p133
        $region99: #{graph_convolution_bs.4} parent=96 // pred_check_branch
          %987 = sbr.rel (%p985) target = $region101
        $region100: #{graph_convolution_bs.4} parent=96 // pred_region
          %s988 = smul.u32 16, %s23
          %p989 = scmp.lt.s32.totalorder %s988, 31
          %s990 = scalar_select %p989, %s988, 31
          %s991 = smul.addr %s990, 4
          %s992 = scalar_lea.vmem %s3, %s991
        $region101: #{graph_convolution_bs.4} parent=96 // pred_fallthru
          _
        // Predicated region
        $region102: #{graph_convolution_bs.4} parent=96 // pred_check
          %p993 = pneg %p159
        $region103: #{graph_convolution_bs.4} parent=96 // pred_check_branch
          %995 = sbr.rel (%p993) target = $region105
        $region104: #{graph_convolution_bs.4} parent=96 // pred_region
          %p996 = scmp.lt.s32.totalorder %s23, 1
          %s997 = scalar_select %p996, %s23, 1
          %s998 = scalar_lea.vmem %s4, %s997
        $region105: #{graph_convolution_bs.4} parent=96 // pred_fallthru
          _
        // Predicated region
        $region106: #{graph_convolution_bs.4} parent=96 // pred_check
          %p999 = pneg %p185
        $region107: #{graph_convolution_bs.4} parent=96 // pred_check_branch
          %1001 = sbr.rel (%p999) target = $region109
        $region108: #{graph_convolution_bs.4} parent=96 // pred_region
          %p1002 = scmp.lt.s32.totalorder %s23, 1
          %s1003 = scalar_select %p1002, %s23, 1
          %s1004 = scalar_lea.vmem %s5, %s1003
        $region109: #{graph_convolution_bs.4} parent=96 // pred_fallthru
          _
      $region97: #{graph_convolution_bs.4} parent=5 // pred_fallthru
        _
    $region6: #{graph_convolution_bs.4} parent=1 // loop_footer
      %s16 = sadd.s32 1, %s12
    $region7: #{graph_convolution_bs.4} parent=1 // loop_footer_branch
      %11 = sbr.rel target = $region3
    $region8: #{graph_convolution_bs.4} parent=1 // loop_exit
      _

</llo_original>
